<compile_context>
chip_gen: v5e
topology: v5e:2x2
jax: 0.10.0
libtpu: 0.0.40
codegen_flags: <defaults>
</compile_context>

<pallas_src>
import jax
import jax.numpy as jnp
from jax.experimental import pallas as pl
from jax.experimental.pallas import tpu as pltpu

LANE = 128  # TPU lane width; fc3 output is padded to this for unmasked lane-dense stores.


def _task_cls_kernel(x_ref, w1_ref, b1_ref, w2_ref, b2_ref, w3_ref, b3_ref, o_ref):
    """One batch tile: fc1 -> ReLU -> fc2 -> ReLU -> fc3 (dropout = identity, eval)."""
    # In-kernel cast: x crosses HBM exactly once in its source dtype; the bf16
    # conversion runs on the VPU and is hidden under the tile DMAs.
    x = x_ref[...].astype(w1_ref.dtype)

    # fc1 + bias + ReLU (f32 accumulation on the MXU).
    h1 = jnp.dot(x, w1_ref[...], preferred_element_type=jnp.float32)
    h1 = jnp.maximum(h1 + b1_ref[...], 0.0).astype(w2_ref.dtype)

    # fc2 + bias + ReLU.
    h2 = jnp.dot(h1, w2_ref[...], preferred_element_type=jnp.float32)
    h2 = jnp.maximum(h2 + b2_ref[...], 0.0).astype(w3_ref.dtype)

    # fc3: output columns lane-padded to 128 (pad columns are zero, sliced off by
    # the wrapper) so the final store is an unmasked, full-lane vst.
    out = jnp.dot(h2, w3_ref[...], preferred_element_type=jnp.float32) + b3_ref[...]
    o_ref[...] = out.astype(o_ref.dtype)


def prepare_params(w1, b1, w2, b2, w3, b3, *, compute_dtype=jnp.bfloat16):
    """One-time weight prep. Cache the result at model-load time, NOT per forward.

    - casts fc weights to the bf16 MXU compute dtype,
    - zero-pads fc3 weight/bias to a 128-lane output width,
    - reshapes biases to (1, n) f32 rows for in-kernel broadcasting.
    Weights are stored transposed vs torch: (in_features, out_features).
    """
    input_dim, hidden_dim = w1.shape
    out_dim = w3.shape[1]
    out_pad = ((out_dim + LANE - 1) // LANE) * LANE

    w1c = w1.astype(compute_dtype)
    w2c = w2.astype(compute_dtype)
    w3c = jnp.zeros((hidden_dim, out_pad), compute_dtype).at[:, :out_dim].set(
        w3.astype(compute_dtype))
    b1c = b1.reshape(1, hidden_dim).astype(jnp.float32)
    b2c = b2.reshape(1, hidden_dim).astype(jnp.float32)
    b3c = jnp.zeros((1, out_pad), jnp.float32).at[:, :out_dim].set(
        b3.astype(jnp.float32))
    return (w1c, b1c, w2c, b2c, w3c, b3c, out_dim)


def _pick_block_rows(batch):
    """Batch tile rows: multiple of 8, >= 2 grid steps when B > 16 (v7x megacore
    sharding + DMA/compute overlap), capped at 1024 rows to amortize per-step
    overhead while staying a few MiB in VMEM on every generation.
    (v5e note: if bundle dumps show spill pressure, pass block_rows=256.)"""
    if batch <= 16:
        return batch
    tb = min(1024, pl.cdiv(batch, 2))
    tb = max(8, (tb // 8) * 8)
    return min(tb, batch)


def task_cls_branch(x, prepared, *, block_rows=None):
    """Fused TaskClsBranch forward (eval mode). x: [B, input_dim] -> [B, output_dim]."""
    w1c, b1c, w2c, b2c, w3c, b3c, out_dim = prepared
    B, input_dim = x.shape
    hidden_dim = w1c.shape[1]
    out_pad = w3c.shape[1]
    out_dtype = jnp.bfloat16  # narrow writeback: only out_dim of out_pad lanes are real

    if block_rows is None:
        tb = _pick_block_rows(B)
    else:
        tb = min(block_rows, B)
        if tb != B:
            tb = max(8, (tb // 8) * 8)  # (8, 128) block-shape constraint

    grid = (pl.cdiv(B, tb),)
    # NOTE: when B is not a multiple of tb, the last partial block's extra rows are
    # computed on padded data and discarded by Pallas; valid rows are unaffected.

    # Weights/biases: same block every grid step -> DMA'd once, stay VMEM-resident.
    resident = lambda a: pl.BlockSpec(a.shape, lambda i: (0, 0))

    w_itemsize = jnp.dtype(w1c.dtype).itemsize
    weight_elems = (input_dim * hidden_dim + hidden_dim * hidden_dim
                    + hidden_dim * out_pad)
    flops = 2 * B * weight_elems
    bytes_accessed = (B * input_dim * x.dtype.itemsize                # x read
                      + weight_elems * w_itemsize                     # weights (once)
                      + (2 * hidden_dim + out_pad) * 4                # biases
                      + B * out_pad * jnp.dtype(out_dtype).itemsize)  # output write

    # Tight scoped-VMEM budget: double-buffered x/out tiles + resident weights
    # (default double-buffered) + f32 intermediates, with ~25% headroom.
    tile_vmem = (2 * tb * input_dim * x.dtype.itemsize
                 + 2 * tb * out_pad * jnp.dtype(out_dtype).itemsize
                 + 2 * (weight_elems * w_itemsize + (2 * hidden_dim + out_pad) * 4)
                 + 3 * tb * hidden_dim * 4)
    vmem_limit = min(64 * 1024 * 1024, max(8 * 1024 * 1024, int(tile_vmem * 1.25)))

    out = pl.pallas_call(
        _task_cls_kernel,
        out_shape=jax.ShapeDtypeStruct((B, out_pad), out_dtype),
        grid=grid,
        in_specs=[
            pl.BlockSpec((tb, input_dim), lambda i: (i, 0)),
            resident(w1c), resident(b1c),
            resident(w2c), resident(b2c),
            resident(w3c), resident(b3c),
        ],
        out_specs=pl.BlockSpec((tb, out_pad), lambda i: (i, 0)),
        compiler_params=pltpu.CompilerParams(
            dimension_semantics=("parallel",),   # megacore sharding on v7x
            vmem_limit_bytes=vmem_limit,
        ),
        cost_estimate=pl.CostEstimate(
            flops=flops, transcendentals=0, bytes_accessed=bytes_accessed),
    )(x, w1c, b1c, w2c, b2c, w3c, b3c)

    # Slice off zero-pad lanes and restore the caller-facing dtype ((B, out_dim) is
    # tiny, so this cast is negligible).
    return out[:, :out_dim].astype(x.dtype)


def init_params(key, input_dim, hidden_dim, output_dim, dtype=jnp.float32):
    """PyTorch nn.Linear-style init (uniform +-1/sqrt(fan_in)).
    Weights stored transposed relative to torch: (in_features, out_features)."""
    ks = jax.random.split(key, 6)

    def linear(kw, kb, fan_in, fan_out):
        bound = 1.0 / jnp.sqrt(fan_in)
        w = jax.random.uniform(kw, (fan_in, fan_out), dtype, -bound, bound)
        b = jax.random.uniform(kb, (fan_out,), dtype, -bound, bound)
        return w, b

    w1, b1 = linear(ks[0], ks[1], input_dim, hidden_dim)
    w2, b2 = linear(ks[2], ks[3], hidden_dim, hidden_dim)
    w3, b3 = linear(ks[4], ks[5], hidden_dim, output_dim)
    return w1, b1, w2, b2, w3, b3


if __name__ == "__main__":
    # Module's real feature dims (input_dim=512, hidden=256, out=4) with a modest
    # batch; default tile selection gives tb=128 -> a 2-step batch grid, exercising
    # the pipelined / megacore-shardable path.
    B, input_dim, hidden_dim, output_dim = 256, 512, 256, 4

    key = jax.random.PRNGKey(0)
    k_x, k_p = jax.random.split(key)
    x = jax.random.normal(k_x, (B, input_dim), jnp.float32)
    raw = init_params(k_p, input_dim, hidden_dim, output_dim)

    # One-time weight prep (cached; per review this must NOT be rebuilt per call).
    prepared = prepare_params(*raw)

    out = jax.block_until_ready(task_cls_branch(x, prepared))

    # Pure-JAX reference with the same bf16-weights / f32-accumulation recipe
    # (eval mode: dropout is identity).
    w1, b1, w2, b2, w3, b3 = raw
    bf = jnp.bfloat16
    ref = jnp.maximum(
        jnp.dot(x.astype(bf), w1.astype(bf), preferred_element_type=jnp.float32) + b1,
        0.0)
    ref = jnp.maximum(
        jnp.dot(ref.astype(bf), w2.astype(bf), preferred_element_type=jnp.float32) + b2,
        0.0)
    ref = jnp.dot(ref.astype(bf), w3.astype(bf),
                  preferred_element_type=jnp.float32) + b3

    assert out.shape == (B, output_dim)
    assert jnp.allclose(out, ref, atol=2e-2, rtol=2e-2), "mismatch vs reference"

    print("KERNEL_OK")
</pallas_src>

<mosaic_0001>
module attributes {stable_mosaic.version = 11 : i64} {
  func.func @_task_cls_kernel(%arg0: i32, %arg1: memref<128x512xf32, #tpu.memory_space<vmem>>, %arg2: memref<512x256xbf16, #tpu.memory_space<vmem>>, %arg3: memref<1x256xf32, #tpu.memory_space<vmem>>, %arg4: memref<256x256xbf16, #tpu.memory_space<vmem>>, %arg5: memref<1x256xf32, #tpu.memory_space<vmem>>, %arg6: memref<256x128xbf16, #tpu.memory_space<vmem>>, %arg7: memref<1x128xf32, #tpu.memory_space<vmem>>, %arg8: memref<128x128xbf16, #tpu.memory_space<vmem>>) attributes {dimension_semantics = [#tpu.dimension_semantics<parallel>], iteration_bounds = array<i64: 2>, scalar_prefetch = 0 : i64, scratch_operands = 0 : i64, tpu.core_type = #tpu.core_type<tc>, window_params = [{transform_indices = @transform_0, window_bounds = array<i64: 128, 512>}, {pipeline_mode = #tpu.pipeline_mode<synchronous>, transform_indices = @transform_1, window_bounds = array<i64: 512, 256>}, {pipeline_mode = #tpu.pipeline_mode<synchronous>, transform_indices = @transform_2, window_bounds = array<i64: 1, 256>}, {pipeline_mode = #tpu.pipeline_mode<synchronous>, transform_indices = @transform_3, window_bounds = array<i64: 256, 256>}, {pipeline_mode = #tpu.pipeline_mode<synchronous>, transform_indices = @transform_4, window_bounds = array<i64: 1, 256>}, {pipeline_mode = #tpu.pipeline_mode<synchronous>, transform_indices = @transform_5, window_bounds = array<i64: 256, 128>}, {pipeline_mode = #tpu.pipeline_mode<synchronous>, transform_indices = @transform_6, window_bounds = array<i64: 1, 128>}, {transform_indices = @transform_7, window_bounds = array<i64: 128, 128>}]} {
    %c0 = arith.constant 0 : index
    %c0_0 = arith.constant 0 : index
    %0 = vector.load %arg1[%c0, %c0_0] : memref<128x512xf32, #tpu.memory_space<vmem>>, vector<128x512xf32>
    %1 = arith.truncf %0 : vector<128x512xf32> to vector<128x512xbf16>
    %c0_1 = arith.constant 0 : index
    %c0_2 = arith.constant 0 : index
    %2 = vector.load %arg2[%c0_1, %c0_2] : memref<512x256xbf16, #tpu.memory_space<vmem>>, vector<512x256xbf16>
    %cst = arith.constant dense<0.000000e+00> : vector<128x256xf32>
    %3 = tpu.matmul %1, %2, %cst {dimension_numbers = #tpu.dot_dimension_numbers<[1], [0], [0], [1], [0, 0, 1, 1], [], []>} : vector<128x512xbf16>, vector<512x256xbf16>, vector<128x256xf32> -> vector<128x256xf32>
    %c0_3 = arith.constant 0 : index
    %c0_4 = arith.constant 0 : index
    %4 = vector.load %arg3[%c0_3, %c0_4] : memref<1x256xf32, #tpu.memory_space<vmem>>, vector<1x256xf32>
    %5 = vector.broadcast %4 : vector<1x256xf32> to vector<128x256xf32>
    %6 = arith.addf %3, %5 : vector<128x256xf32>
    %cst_5 = arith.constant 0.000000e+00 : f32
    %7 = vector.broadcast %cst_5 : f32 to vector<128x256xf32>
    %8 = arith.maximumf %6, %7 : vector<128x256xf32>
    %9 = arith.truncf %8 : vector<128x256xf32> to vector<128x256xbf16>
    %c0_6 = arith.constant 0 : index
    %c0_7 = arith.constant 0 : index
    %10 = vector.load %arg4[%c0_6, %c0_7] : memref<256x256xbf16, #tpu.memory_space<vmem>>, vector<256x256xbf16>
    %cst_8 = arith.constant dense<0.000000e+00> : vector<128x256xf32>
    %11 = tpu.matmul %9, %10, %cst_8 {dimension_numbers = #tpu.dot_dimension_numbers<[1], [0], [0], [1], [0, 0, 1, 1], [], []>} : vector<128x256xbf16>, vector<256x256xbf16>, vector<128x256xf32> -> vector<128x256xf32>
    %c0_9 = arith.constant 0 : index
    %c0_10 = arith.constant 0 : index
    %12 = vector.load %arg5[%c0_9, %c0_10] : memref<1x256xf32, #tpu.memory_space<vmem>>, vector<1x256xf32>
    %13 = vector.broadcast %12 : vector<1x256xf32> to vector<128x256xf32>
    %14 = arith.addf %11, %13 : vector<128x256xf32>
    %cst_11 = arith.constant 0.000000e+00 : f32
    %15 = vector.broadcast %cst_11 : f32 to vector<128x256xf32>
    %16 = arith.maximumf %14, %15 : vector<128x256xf32>
    %17 = arith.truncf %16 : vector<128x256xf32> to vector<128x256xbf16>
    %c0_12 = arith.constant 0 : index
    %c0_13 = arith.constant 0 : index
    %18 = vector.load %arg6[%c0_12, %c0_13] : memref<256x128xbf16, #tpu.memory_space<vmem>>, vector<256x128xbf16>
    %cst_14 = arith.constant dense<0.000000e+00> : vector<128x128xf32>
    %19 = tpu.matmul %17, %18, %cst_14 {dimension_numbers = #tpu.dot_dimension_numbers<[1], [0], [0], [1], [0, 0, 1, 1], [], []>} : vector<128x256xbf16>, vector<256x128xbf16>, vector<128x128xf32> -> vector<128x128xf32>
    %c0_15 = arith.constant 0 : index
    %c0_16 = arith.constant 0 : index
    %20 = vector.load %arg7[%c0_15, %c0_16] : memref<1x128xf32, #tpu.memory_space<vmem>>, vector<1x128xf32>
    %21 = vector.broadcast %20 : vector<1x128xf32> to vector<128x128xf32>
    %22 = arith.addf %19, %21 : vector<128x128xf32>
    %23 = arith.truncf %22 : vector<128x128xf32> to vector<128x128xbf16>
    %c0_17 = arith.constant 0 : index
    %c0_18 = arith.constant 0 : index
    %24 = vector.load %arg8[%c0_17, %c0_18] : memref<128x128xbf16, #tpu.memory_space<vmem>>, vector<128x128xbf16>
    tpu.vector_store %arg8[%c0_17, %c0_18], %23 {strides = array<i32>} : memref<128x128xbf16, #tpu.memory_space<vmem>>, vector<128x128xbf16>,
    return
  }
  func.func @transform_0(%arg0: i32) -> (i32, i32) {
    %c0_i32 = arith.constant 0 : i32
    %c0_i32_0 = arith.constant 0 : i32
    return %arg0, %c0_i32 : i32, i32
  }
  func.func @transform_1(%arg0: i32) -> (i32, i32) {
    %c0_i32 = arith.constant 0 : i32
    %c0_i32_0 = arith.constant 0 : i32
    %c0_i32_1 = arith.constant 0 : i32
    return %c0_i32, %c0_i32_0 : i32, i32
  }
  func.func @transform_2(%arg0: i32) -> (i32, i32) {
    %c0_i32 = arith.constant 0 : i32
    %c0_i32_0 = arith.constant 0 : i32
    %c0_i32_1 = arith.constant 0 : i32
    return %c0_i32, %c0_i32_0 : i32, i32
  }
  func.func @transform_3(%arg0: i32) -> (i32, i32) {
    %c0_i32 = arith.constant 0 : i32
    %c0_i32_0 = arith.constant 0 : i32
    %c0_i32_1 = arith.constant 0 : i32
    return %c0_i32, %c0_i32_0 : i32, i32
  }
  func.func @transform_4(%arg0: i32) -> (i32, i32) {
    %c0_i32 = arith.constant 0 : i32
    %c0_i32_0 = arith.constant 0 : i32
    %c0_i32_1 = arith.constant 0 : i32
    return %c0_i32, %c0_i32_0 : i32, i32
  }
  func.func @transform_5(%arg0: i32) -> (i32, i32) {
    %c0_i32 = arith.constant 0 : i32
    %c0_i32_0 = arith.constant 0 : i32
    %c0_i32_1 = arith.constant 0 : i32
    return %c0_i32, %c0_i32_0 : i32, i32
  }
  func.func @transform_6(%arg0: i32) -> (i32, i32) {
    %c0_i32 = arith.constant 0 : i32
    %c0_i32_0 = arith.constant 0 : i32
    %c0_i32_1 = arith.constant 0 : i32
    return %c0_i32, %c0_i32_0 : i32, i32
  }
  func.func @transform_7(%arg0: i32) -> (i32, i32) {
    %c0_i32 = arith.constant 0 : i32
    %c0_i32_0 = arith.constant 0 : i32
    return %arg0, %c0_i32 : i32, i32
  }
}

</mosaic_0001>

<llo_original>
// kernel: tpu_custom_call.1
$region0: #{tpu_custom_call.1}
  #allocation0 [shape = 'u32[]', space=smem, size = 0x4, offset = 0x4, fixed_abs, tag = 'smem constant byte address 0x4 - core index']
  #allocation1 [shape = 'u32[72,128]{1,0:T(1,128)}', space=vmem, size = 0x9000, scoped, tag = 'internal scratch']
  %s0 = inlined_call_operand.hbm [shape: f32[256,512], index: 0, kind: input, shape index: {}]
  %s1 = inlined_call_operand.hbm [shape: bf16[512,256], index: 1, kind: input, shape index: {}]
  %s2 = inlined_call_operand.hbm [shape: f32[1,256], index: 2, kind: input, shape index: {}]
  %s3 = inlined_call_operand.hbm [shape: bf16[256,256], index: 3, kind: input, shape index: {}]
  %s4 = inlined_call_operand.vmem [shape: f32[1,256], index: 4, kind: input, shape index: {}]
  %s5 = inlined_call_operand.hbm [shape: bf16[256,128], index: 5, kind: input, shape index: {}]
  %s6 = inlined_call_operand.vmem [shape: f32[1,128], index: 6, kind: input, shape index: {}]
  %s7 = inlined_call_operand.hbm [shape: bf16[256,128], index: 7, kind: output, shape index: {}]
  %s8 = sld [smem:[#allocation0]]
  $region81: #{tpu_custom_call.1} parent=0
    _
  %s10 = ssub.s32 1, %s8
  %s11 = scalar_select 0, %s10, %s8
  $region1: #{tpu_custom_call.1} parent=0
    #allocation2 [shape = 'u8[524288]{0}', space=vmem, size = 0x80000, scoped, tag = 'input window, operand 0']
    #allocation3 [shape = 's32[2]{0}', space=sflag, size = 0x8, scoped, tag = 'scoped memory for tpu_custom_call.1']
    #allocation4 [shape = 's32[2]{0}', space=sflag, size = 0x8, scoped, tag = 'scoped memory for tpu_custom_call.1']
    #allocation5 [shape = 'u8[262144]{0}', space=vmem, size = 0x40000, scoped, tag = 'input window, operand 1, single buffered']
    #allocation6 [shape = 's32[1]{0}', space=sflag, size = 0x4, scoped, tag = 'scoped memory for tpu_custom_call.1']
    #allocation7 [shape = 'u8[1024]{0}', space=vmem, size = 0x400, scoped, tag = 'input window, operand 2, single buffered']
    #allocation8 [shape = 'u8[131072]{0}', space=vmem, size = 0x20000, scoped, tag = 'input window, operand 3, single buffered']
    #allocation9 [shape = 's32[1]{0}', space=sflag, size = 0x4, scoped, tag = 'scoped memory for tpu_custom_call.1']
    #allocation10 [shape = 'u8[65536]{0}', space=vmem, size = 0x10000, scoped, tag = 'input window, operand 5, single buffered']
    #allocation11 [shape = 'u8[65536]{0}', space=vmem, size = 0x10000, scoped, tag = 'output window, operand 0']
    %12 = vsyncpa [#allocation3], 0
    %s13 = scalar_lea.sflag [#allocation3], 1
    %14 = vsyncpa %s13, 0
    %15 = vsyncpa [#allocation6], 0
    %16 = vsyncpa [#allocation9], 0
    %17 = vsyncpa [#allocation4], 0
    %s18 = scalar_lea.sflag [#allocation4], 1
    %19 = vsyncpa %s18, 0
    loop: start=0, step=1, limit=4
    $region2: #{tpu_custom_call.1} parent=1 // loop_pre_header
      _
    $region3: #{tpu_custom_call.1} parent=1 // loop_header
      %s21 = sphi 0, %s25
      %p22 = scmp.ge.s32.totalorder %s21, 4
      %s31 = sphi 0, %s33
      %s34 = sphi 0, %s31
      %s35 = sphi 0, %s34
      %s51 = sphi 0, %s35
      %s55 = sphi 0, %s55
      %s57 = sphi 0, %s55
      %s58 = sphi 0, %s57
      %s72 = sphi 0, %s58
      %s76 = sphi 0, %s76
      %s78 = sphi 0, %s76
      %s79 = sphi 0, %s78
      %s93 = sphi 0, %s79
      %s97 = sphi 0, %s97
      %s99 = sphi 0, %s97
      %s100 = sphi 0, %s99
      %s114 = sphi 0, %s100
      %s118 = sphi 0, %s118
      %s120 = sphi 0, %s118
      %s121 = sphi 0, %s120
      %s135 = sphi 0, %s121
      %s139 = sphi 0, %s139
      %s141 = sphi 0, %s139
      %s142 = sphi 0, %s141
      %s156 = sphi 0, %s142
      %s160 = sphi 0, %s160
      %s162 = sphi 0, %s160
      %s163 = sphi 0, %s162
      %s177 = sphi 0, %s163
      %s183 = sphi 0, %s185
      %s186 = sphi 0, %s183
      %s187 = sphi 0, %s186
      %s203 = sphi 0, %s187
    $region4: #{tpu_custom_call.1} parent=1 // loop_header_branch
      %24 = sbr.rel (%p22) target = $region8
    $region5: #{tpu_custom_call.1} parent=1 // loop_body
      %s26 = ssub.s32 %s21, 1
      %s27 = ssub.s32 %s21, 2
      %s28 = sadd.s32 %s21, 1
      %s29 = ssub.s32 %s21, %s28
      %p30 = scmp.eq.s32.totalorder %s29, 0
      %s32 = sadd.s32 %s31, 1
      %s33 = scalar_select %p30, %s31, %s32
      %p36 = pneg %p30
      %p37 = scmp.eq.s32.totalorder %s21, 1
      %p38 = por %p36, %p37
      %p39 = scmp.ne.s32.totalorder %s31, %s34
      %p40 = scmp.eq.s32.totalorder %s21, 0
      %p41 = por %p39, %p40
      %p42 = scmp.ne.s32.totalorder %s31, %s34
      %p43 = scmp.eq.s32.totalorder %s26, 1
      %p44 = por %p42, %p43
      %p45 = scmp.ne.s32.totalorder %s34, %s35
      %p46 = scmp.eq.s32.totalorder %s26, 0
      %p47 = por %p45, %p46
      %p48 = scmp.ne.s32.totalorder %s34, %s35
      %p49 = scmp.eq.s32.totalorder %s27, 1
      %p50 = por %p48, %p49
      %p52 = scmp.ne.s32.totalorder %s35, %s51
      %p53 = scmp.eq.s32.totalorder %s27, 0
      %p54 = por %p52, %p53
      %s56 = sadd.s32 %s55, 1
      %p59 = scmp.eq.s32.totalorder %s21, 1
      %p60 = scmp.ne.s32.totalorder %s55, %s57
      %p61 = scmp.eq.s32.totalorder %s21, 0
      %p62 = por %p60, %p61
      %p63 = scmp.ne.s32.totalorder %s55, %s57
      %p64 = scmp.eq.s32.totalorder %s26, 1
      %p65 = por %p63, %p64
      %p66 = scmp.ne.s32.totalorder %s57, %s58
      %p67 = scmp.eq.s32.totalorder %s26, 0
      %p68 = por %p66, %p67
      %p69 = scmp.ne.s32.totalorder %s57, %s58
      %p70 = scmp.eq.s32.totalorder %s27, 1
      %p71 = por %p69, %p70
      %p73 = scmp.ne.s32.totalorder %s58, %s72
      %p74 = scmp.eq.s32.totalorder %s27, 0
      %p75 = por %p73, %p74
      %s77 = sadd.s32 %s76, 1
      %p80 = scmp.eq.s32.totalorder %s21, 1
      %p81 = scmp.ne.s32.totalorder %s76, %s78
      %p82 = scmp.eq.s32.totalorder %s21, 0
      %p83 = por %p81, %p82
      %p84 = scmp.ne.s32.totalorder %s76, %s78
      %p85 = scmp.eq.s32.totalorder %s26, 1
      %p86 = por %p84, %p85
      %p87 = scmp.ne.s32.totalorder %s78, %s79
      %p88 = scmp.eq.s32.totalorder %s26, 0
      %p89 = por %p87, %p88
      %p90 = scmp.ne.s32.totalorder %s78, %s79
      %p91 = scmp.eq.s32.totalorder %s27, 1
      %p92 = por %p90, %p91
      %p94 = scmp.ne.s32.totalorder %s79, %s93
      %p95 = scmp.eq.s32.totalorder %s27, 0
      %p96 = por %p94, %p95
      %s98 = sadd.s32 %s97, 1
      %p101 = scmp.eq.s32.totalorder %s21, 1
      %p102 = scmp.ne.s32.totalorder %s97, %s99
      %p103 = scmp.eq.s32.totalorder %s21, 0
      %p104 = por %p102, %p103
      %p105 = scmp.ne.s32.totalorder %s97, %s99
      %p106 = scmp.eq.s32.totalorder %s26, 1
      %p107 = por %p105, %p106
      %p108 = scmp.ne.s32.totalorder %s99, %s100
      %p109 = scmp.eq.s32.totalorder %s26, 0
      %p110 = por %p108, %p109
      %p111 = scmp.ne.s32.totalorder %s99, %s100
      %p112 = scmp.eq.s32.totalorder %s27, 1
      %p113 = por %p111, %p112
      %p115 = scmp.ne.s32.totalorder %s100, %s114
      %p116 = scmp.eq.s32.totalorder %s27, 0
      %p117 = por %p115, %p116
      %s119 = sadd.s32 %s118, 1
      %p122 = scmp.eq.s32.totalorder %s21, 1
      %p123 = scmp.ne.s32.totalorder %s118, %s120
      %p124 = scmp.eq.s32.totalorder %s21, 0
      %p125 = por %p123, %p124
      %p126 = scmp.ne.s32.totalorder %s118, %s120
      %p127 = scmp.eq.s32.totalorder %s26, 1
      %p128 = por %p126, %p127
      %p129 = scmp.ne.s32.totalorder %s120, %s121
      %p130 = scmp.eq.s32.totalorder %s26, 0
      %p131 = por %p129, %p130
      %p132 = scmp.ne.s32.totalorder %s120, %s121
      %p133 = scmp.eq.s32.totalorder %s27, 1
      %p134 = por %p132, %p133
      %p136 = scmp.ne.s32.totalorder %s121, %s135
      %p137 = scmp.eq.s32.totalorder %s27, 0
      %p138 = por %p136, %p137
      %s140 = sadd.s32 %s139, 1
      %p143 = scmp.eq.s32.totalorder %s21, 1
      %p144 = scmp.ne.s32.totalorder %s139, %s141
      %p145 = scmp.eq.s32.totalorder %s21, 0
      %p146 = por %p144, %p145
      %p147 = scmp.ne.s32.totalorder %s139, %s141
      %p148 = scmp.eq.s32.totalorder %s26, 1
      %p149 = por %p147, %p148
      %p150 = scmp.ne.s32.totalorder %s141, %s142
      %p151 = scmp.eq.s32.totalorder %s26, 0
      %p152 = por %p150, %p151
      %p153 = scmp.ne.s32.totalorder %s141, %s142
      %p154 = scmp.eq.s32.totalorder %s27, 1
      %p155 = por %p153, %p154
      %p157 = scmp.ne.s32.totalorder %s142, %s156
      %p158 = scmp.eq.s32.totalorder %s27, 0
      %p159 = por %p157, %p158
      %s161 = sadd.s32 %s160, 1
      %p164 = scmp.eq.s32.totalorder %s21, 1
      %p165 = scmp.ne.s32.totalorder %s160, %s162
      %p166 = scmp.eq.s32.totalorder %s21, 0
      %p167 = por %p165, %p166
      %p168 = scmp.ne.s32.totalorder %s160, %s162
      %p169 = scmp.eq.s32.totalorder %s26, 1
      %p170 = por %p168, %p169
      %p171 = scmp.ne.s32.totalorder %s162, %s163
      %p172 = scmp.eq.s32.totalorder %s26, 0
      %p173 = por %p171, %p172
      %p174 = scmp.ne.s32.totalorder %s162, %s163
      %p175 = scmp.eq.s32.totalorder %s27, 1
      %p176 = por %p174, %p175
      %p178 = scmp.ne.s32.totalorder %s163, %s177
      %p179 = scmp.eq.s32.totalorder %s27, 0
      %p180 = por %p178, %p179
      %s181 = ssub.s32 %s21, %s28
      %p182 = scmp.eq.s32.totalorder %s181, 0
      %s184 = sadd.s32 %s183, 1
      %s185 = scalar_select %p182, %s183, %s184
      %p188 = pneg %p182
      %p189 = scmp.eq.s32.totalorder %s21, 1
      %p190 = por %p188, %p189
      %p191 = scmp.ne.s32.totalorder %s183, %s186
      %p192 = scmp.eq.s32.totalorder %s21, 0
      %p193 = por %p191, %p192
      %p194 = scmp.ne.s32.totalorder %s183, %s186
      %p195 = scmp.eq.s32.totalorder %s26, 1
      %p196 = por %p194, %p195
      %p197 = scmp.ne.s32.totalorder %s186, %s187
      %p198 = scmp.eq.s32.totalorder %s26, 0
      %p199 = por %p197, %p198
      %p200 = scmp.ne.s32.totalorder %s186, %s187
      %p201 = scmp.eq.s32.totalorder %s27, 1
      %p202 = por %p200, %p201
      %p204 = scmp.ne.s32.totalorder %s187, %s203
      %p205 = scmp.eq.s32.totalorder %s27, 0
      %p206 = por %p204, %p205
      %p207 = scmp.le.s32.totalorder 1, %s21
      %p208 = scmp.lt.s32.totalorder %s21, 3
      %p209 = pnand %p207, %p208
      %p210 = pneg %p209
      // Predicated region
      $region9: #{tpu_custom_call.1} parent=5 // pred_check
        _
      $region10: #{tpu_custom_call.1} parent=5 // pred_check_branch
        %212 = sbr.rel (%p209) target = $region12
      $region11: #{tpu_custom_call.1} parent=5 // pred_region
        %s213 = ssub.s32 %s21, 1
        // Predicated region
        $region13: #{tpu_custom_call.1} parent=11 // pred_check
          %p214 = pneg %p68
        $region14: #{tpu_custom_call.1} parent=11 // pred_check_branch
          %216 = sbr.rel (%p214) target = $region16
        $region15: #{tpu_custom_call.1} parent=11 // pred_region
          %218 = vsyncadd [#allocation6], 0
          %s219 = sshll.u32 %s1, 4
          %s220 = int_to_ptr.hbm [resolvable:$true] %s219
          %s221 = sshll.u32 [#allocation5], 4
          %s222 = int_to_ptr.vmem [resolvable:$true] %s221
          %227 = dma.hbm_to_vmem [thread:$0]  %s220, 8192, %s222, [#allocation6], 128, 128, 8
        $region16: #{tpu_custom_call.1} parent=11 // pred_fallthru
          _
        // Predicated region
        $region17: #{tpu_custom_call.1} parent=11 // pred_check
          %p228 = pneg %p89
        $region18: #{tpu_custom_call.1} parent=11 // pred_check_branch
          %230 = sbr.rel (%p228) target = $region20
        $region19: #{tpu_custom_call.1} parent=11 // pred_region
          %232 = vsyncadd [#allocation6], 0
          %s234 = sshll.u32 %s2, 4
          %s235 = int_to_ptr.hbm [resolvable:$true] %s234
          %s236 = sshll.u32 [#allocation7], 4
          %s237 = int_to_ptr.vmem [resolvable:$true] %s236
          %239 = dma.hbm_to_vmem [thread:$0]  %s235, 32, %s237, [#allocation6]
        $region20: #{tpu_custom_call.1} parent=11 // pred_fallthru
          _
        // Predicated region
        $region21: #{tpu_custom_call.1} parent=11 // pred_check
          %p240 = pneg %p110
        $region22: #{tpu_custom_call.1} parent=11 // pred_check_branch
          %242 = sbr.rel (%p240) target = $region24
        $region23: #{tpu_custom_call.1} parent=11 // pred_region
          %244 = vsyncadd [#allocation9], 0
          %s245 = sshll.u32 %s3, 4
          %s246 = int_to_ptr.hbm [resolvable:$true] %s245
          %s247 = sshll.u32 [#allocation8], 4
          %s248 = int_to_ptr.vmem [resolvable:$true] %s247
          %253 = dma.hbm_to_vmem [thread:$0]  %s246, 4096, %s248, [#allocation9], 128, 128, 8
        $region24: #{tpu_custom_call.1} parent=11 // pred_fallthru
          _
        // Predicated region
        $region25: #{tpu_custom_call.1} parent=11 // pred_check
          %p254 = pneg %p131
        $region26: #{tpu_custom_call.1} parent=11 // pred_check_branch
          %256 = sbr.rel (%p254) target = $region28
        $region27: #{tpu_custom_call.1} parent=11 // pred_region
          _
        $region28: #{tpu_custom_call.1} parent=11 // pred_fallthru
          _
        // Predicated region
        $region29: #{tpu_custom_call.1} parent=11 // pred_check
          %p257 = pneg %p152
        $region30: #{tpu_custom_call.1} parent=11 // pred_check_branch
          %259 = sbr.rel (%p257) target = $region32
        $region31: #{tpu_custom_call.1} parent=11 // pred_region
          %261 = vsyncadd [#allocation9], 0
          %s262 = sshll.u32 %s5, 4
          %s263 = int_to_ptr.hbm [resolvable:$true] %s262
          %s264 = sshll.u32 [#allocation10], 4
          %s265 = int_to_ptr.vmem [resolvable:$true] %s264
          %270 = dma.hbm_to_vmem [thread:$0]  %s263, 2048, %s265, [#allocation9], 64, 64, 4
        $region32: #{tpu_custom_call.1} parent=11 // pred_fallthru
          _
        // Predicated region
        $region33: #{tpu_custom_call.1} parent=11 // pred_check
          %p271 = pneg %p173
        $region34: #{tpu_custom_call.1} parent=11 // pred_check_branch
          %273 = sbr.rel (%p271) target = $region36
        $region35: #{tpu_custom_call.1} parent=11 // pred_region
          _
        $region36: #{tpu_custom_call.1} parent=11 // pred_fallthru
          _
      $region12: #{tpu_custom_call.1} parent=5 // pred_fallthru
        _
      %p274 = scmp.lt.s32.totalorder %s21, 2
      // Predicated region
      $region37: #{tpu_custom_call.1} parent=5 // pred_check
        %p275 = pneg %p274
      $region38: #{tpu_custom_call.1} parent=5 // pred_check_branch
        %277 = sbr.rel (%p275) target = $region40
      $region39: #{tpu_custom_call.1} parent=5 // pred_region
        // Predicated region
        $region41: #{tpu_custom_call.1} parent=39 // pred_check
          %p278 = pneg %p41
        $region42: #{tpu_custom_call.1} parent=39 // pred_check_branch
          %280 = sbr.rel (%p278) target = $region44
        $region43: #{tpu_custom_call.1} parent=39 // pred_region
          %s281 = sand.u32 %s31, 1
          %s282 = scalar_lea.sflag [#allocation3], %s281
          %s283 = sand.u32 %s31, 1
          %s284 = smul.addr %s283, 512
          %s285 = scalar_lea.vmem [#allocation2], %s284
          %s286 = smul.u32 16, %s21
          %288 = vsyncadd %s282, 0
          %s289 = smul.addr %s286, 4
          %s290 = smul.addr %s289, 8
          %s291 = scalar_lea.hbm %s0, %s290
          %s292 = sshll.u32 %s291, 4
          %s293 = int_to_ptr.hbm [resolvable:$true] %s292
          %s294 = sshll.u32 %s285, 4
          %s295 = int_to_ptr.vmem [resolvable:$true] %s294
          %300 = dma.hbm_to_vmem [thread:$0]  %s293, 8192, %s295, %s282, 512, 512, 32
        $region44: #{tpu_custom_call.1} parent=39 // pred_fallthru
          _
      $region40: #{tpu_custom_call.1} parent=5 // pred_fallthru
        _
      %p301 = scmp.le.s32.totalorder 1, %s21
      %p302 = scmp.lt.s32.totalorder %s21, 3
      %p303 = pnand %p301, %p302
      %p304 = pneg %p303
      // Predicated region
      $region45: #{tpu_custom_call.1} parent=5 // pred_check
        _
      $region46: #{tpu_custom_call.1} parent=5 // pred_check_branch
        %306 = sbr.rel (%p303) target = $region48
      $region47: #{tpu_custom_call.1} parent=5 // pred_region
        %s307 = ssub.s32 %s21, 1
        %s308 = sand.u32 %s34, 1
        %s309 = scalar_lea.sflag [#allocation3], %s308
        %s310 = sand.u32 %s34, 1
        %s311 = smul.addr %s310, 512
        %s312 = scalar_lea.vmem [#allocation2], %s311
        // Predicated region
        $region49: #{tpu_custom_call.1} parent=47 // pred_check
          %p313 = pneg %p47
        $region50: #{tpu_custom_call.1} parent=47 // pred_check_branch
          %315 = sbr.rel (%p313) target = $region52
        $region51: #{tpu_custom_call.1} parent=47 // pred_region
          %317 = dma.done %s309, 8192
        $region52: #{tpu_custom_call.1} parent=47 // pred_fallthru
          _
        // Predicated region
        $region53: #{tpu_custom_call.1} parent=47 // pred_check
          %p318 = pneg %p68
        $region54: #{tpu_custom_call.1} parent=47 // pred_check_branch
          %320 = sbr.rel (%p318) target = $region56
        $region55: #{tpu_custom_call.1} parent=47 // pred_region
          %322 = dma.done [#allocation6], 8192
        $region56: #{tpu_custom_call.1} parent=47 // pred_fallthru
          _
        // Predicated region
        $region57: #{tpu_custom_call.1} parent=47 // pred_check
          %p323 = pneg %p89
        $region58: #{tpu_custom_call.1} parent=47 // pred_check_branch
          %325 = sbr.rel (%p323) target = $region60
        $region59: #{tpu_custom_call.1} parent=47 // pred_region
          %327 = dma.done [#allocation6], 32
        $region60: #{tpu_custom_call.1} parent=47 // pred_fallthru
          _
        // Predicated region
        $region61: #{tpu_custom_call.1} parent=47 // pred_check
          %p328 = pneg %p110
        $region62: #{tpu_custom_call.1} parent=47 // pred_check_branch
          %330 = sbr.rel (%p328) target = $region64
        $region63: #{tpu_custom_call.1} parent=47 // pred_region
          %332 = dma.done [#allocation9], 4096
        $region64: #{tpu_custom_call.1} parent=47 // pred_fallthru
          _
        // Predicated region
        $region65: #{tpu_custom_call.1} parent=47 // pred_check
          %p333 = pneg %p152
        $region66: #{tpu_custom_call.1} parent=47 // pred_check_branch
          %335 = sbr.rel (%p333) target = $region68
        $region67: #{tpu_custom_call.1} parent=47 // pred_region
          %337 = dma.done [#allocation9], 2048
        $region68: #{tpu_custom_call.1} parent=47 // pred_fallthru
          _
        %s338 = sand.u32 %s34, 1
        %s339 = scalar_lea.sflag [#allocation3], %s338
        %s340 = sand.u32 %s34, 1
        %s341 = smul.addr %s340, 512
        %s342 = scalar_lea.vmem [#allocation2], %s341
        %p343 = pneg %p47
        %p344 = pneg %p44
        %p345 = pneg %p68
        %p346 = pneg %p65
        %p347 = pneg %p89
        %p348 = pneg %p86
        %p349 = pneg %p110
        %p350 = pneg %p107
        %p351 = pneg %p131
        %p352 = pneg %p128
        %p353 = pneg %p152
        %p354 = pneg %p149
        %p355 = pneg %p173
        %p356 = pneg %p170
        %p357 = pneg %p199
        %p358 = pneg %p196
        %s359 = sand.u32 %s186, 1
        %s360 = scalar_lea.sflag [#allocation4], %s359
        %s361 = sand.u32 %s186, 1
        %s362 = smul.addr %s361, 64
        %s363 = scalar_lea.vmem [#allocation11], %s362
        %s364 = smul.u32 16, %s26
        %s365 = smul.u32 16, %s26
        %v366 = vld [vmem:[%s312] sm:$0xff]
        %v367 = vld [vmem:[%s312 + $0x8] sm:$0xff]
        %v368 = vld [vmem:[%s312 + $0x10] sm:$0xff]
        %v369 = vld [vmem:[%s312 + $0x18] sm:$0xff]
        %v370 = vld [vmem:[%s312 + $0x20] sm:$0xff]
        %v371 = vld [vmem:[%s312 + $0x28] sm:$0xff]
        %v372 = vld [vmem:[%s312 + $0x30] sm:$0xff]
        %v373 = vld [vmem:[%s312 + $0x38] sm:$0xff]
        %v374 = vld [vmem:[%s312 + $0x40] sm:$0xff]
        %v375 = vld [vmem:[%s312 + $0x48] sm:$0xff]
        %v376 = vld [vmem:[%s312 + $0x50] sm:$0xff]
        %v377 = vld [vmem:[%s312 + $0x58] sm:$0xff]
        %v378 = vld [vmem:[%s312 + $0x60] sm:$0xff]
        %v379 = vld [vmem:[%s312 + $0x68] sm:$0xff]
        %v380 = vld [vmem:[%s312 + $0x70] sm:$0xff]
        %v381 = vld [vmem:[%s312 + $0x78] sm:$0xff]
        %v382 = vld [vmem:[%s312 + $0x80] sm:$0xff]
        %v383 = vld [vmem:[%s312 + $0x88] sm:$0xff]
        %v384 = vld [vmem:[%s312 + $0x90] sm:$0xff]
        %v385 = vld [vmem:[%s312 + $0x98] sm:$0xff]
        %v386 = vld [vmem:[%s312 + $0xa0] sm:$0xff]
        %v387 = vld [vmem:[%s312 + $0xa8] sm:$0xff]
        %v388 = vld [vmem:[%s312 + $0xb0] sm:$0xff]
        %v389 = vld [vmem:[%s312 + $0xb8] sm:$0xff]
        %v390 = vld [vmem:[%s312 + $0xc0] sm:$0xff]
        %v391 = vld [vmem:[%s312 + $0xc8] sm:$0xff]
        %v392 = vld [vmem:[%s312 + $0xd0] sm:$0xff]
        %v393 = vld [vmem:[%s312 + $0xd8] sm:$0xff]
        %v394 = vld [vmem:[%s312 + $0xe0] sm:$0xff]
        %v395 = vld [vmem:[%s312 + $0xe8] sm:$0xff]
        %v396 = vld [vmem:[%s312 + $0xf0] sm:$0xff]
        %v397 = vld [vmem:[%s312 + $0xf8] sm:$0xff]
        %v398 = vld [vmem:[%s312 + $0x100] sm:$0xff]
        %v399 = vld [vmem:[%s312 + $0x108] sm:$0xff]
        %v400 = vld [vmem:[%s312 + $0x110] sm:$0xff]
        %v401 = vld [vmem:[%s312 + $0x118] sm:$0xff]
        %v402 = vld [vmem:[%s312 + $0x120] sm:$0xff]
        %v403 = vld [vmem:[%s312 + $0x128] sm:$0xff]
        %v404 = vld [vmem:[%s312 + $0x130] sm:$0xff]
        %v405 = vld [vmem:[%s312 + $0x138] sm:$0xff]
        %v406 = vld [vmem:[%s312 + $0x140] sm:$0xff]
        %v407 = vld [vmem:[%s312 + $0x148] sm:$0xff]
        %v408 = vld [vmem:[%s312 + $0x150] sm:$0xff]
        %v409 = vld [vmem:[%s312 + $0x158] sm:$0xff]
        %v410 = vld [vmem:[%s312 + $0x160] sm:$0xff]
        %v411 = vld [vmem:[%s312 + $0x168] sm:$0xff]
        %v412 = vld [vmem:[%s312 + $0x170] sm:$0xff]
        %v413 = vld [vmem:[%s312 + $0x178] sm:$0xff]
        %v414 = vld [vmem:[%s312 + $0x180] sm:$0xff]
        %v415 = vld [vmem:[%s312 + $0x188] sm:$0xff]
        %v416 = vld [vmem:[%s312 + $0x190] sm:$0xff]
        %v417 = vld [vmem:[%s312 + $0x198] sm:$0xff]
        %v418 = vld [vmem:[%s312 + $0x1a0] sm:$0xff]
        %v419 = vld [vmem:[%s312 + $0x1a8] sm:$0xff]
        %v420 = vld [vmem:[%s312 + $0x1b0] sm:$0xff]
        %v421 = vld [vmem:[%s312 + $0x1b8] sm:$0xff]
        %v422 = vld [vmem:[%s312 + $0x1c0] sm:$0xff]
        %v423 = vld [vmem:[%s312 + $0x1c8] sm:$0xff]
        %v424 = vld [vmem:[%s312 + $0x1d0] sm:$0xff]
        %v425 = vld [vmem:[%s312 + $0x1d8] sm:$0xff]
        %v426 = vld [vmem:[%s312 + $0x1e0] sm:$0xff]
        %v427 = vld [vmem:[%s312 + $0x1e8] sm:$0xff]
        %v428 = vld [vmem:[%s312 + $0x1f0] sm:$0xff]
        %v429 = vld [vmem:[%s312 + $0x1f8] sm:$0xff]
        %v430 = vpack.c.bf16 %v370, %v366
        %v431 = vpack.c.bf16 %v371, %v367
        %v432 = vpack.c.bf16 %v372, %v368
        %v433 = vpack.c.bf16 %v373, %v369
        %v434 = vpack.c.bf16 %v378, %v374
        %v435 = vpack.c.bf16 %v379, %v375
        %v436 = vpack.c.bf16 %v380, %v376
        %v437 = vpack.c.bf16 %v381, %v377
        %v438 = vpack.c.bf16 %v386, %v382
        %v439 = vpack.c.bf16 %v387, %v383
        %v440 = vpack.c.bf16 %v388, %v384
        %v441 = vpack.c.bf16 %v389, %v385
        %v442 = vpack.c.bf16 %v394, %v390
        %v443 = vpack.c.bf16 %v395, %v391
        %v444 = vpack.c.bf16 %v396, %v392
        %v445 = vpack.c.bf16 %v397, %v393
        %v446 = vpack.c.bf16 %v402, %v398
        %v447 = vpack.c.bf16 %v403, %v399
        %v448 = vpack.c.bf16 %v404, %v400
        %v449 = vpack.c.bf16 %v405, %v401
        %v450 = vpack.c.bf16 %v410, %v406
        %v451 = vpack.c.bf16 %v411, %v407
        %v452 = vpack.c.bf16 %v412, %v408
        %v453 = vpack.c.bf16 %v413, %v409
        %v454 = vpack.c.bf16 %v418, %v414
        %v455 = vpack.c.bf16 %v419, %v415
        %v456 = vpack.c.bf16 %v420, %v416
        %v457 = vpack.c.bf16 %v421, %v417
        %v458 = vpack.c.bf16 %v426, %v422
        %v459 = vpack.c.bf16 %v427, %v423
        %v460 = vpack.c.bf16 %v428, %v424
        %v461 = vpack.c.bf16 %v429, %v425
        %v462 = vld [vmem:[#allocation5] sm:$0xff]
        %v463 = vld [vmem:[#allocation5 + $0x8] sm:$0xff]
        %v464 = vld [vmem:[#allocation5 + $0x10] sm:$0xff]
        %v465 = vld [vmem:[#allocation5 + $0x18] sm:$0xff]
        %v466 = vld [vmem:[#allocation5 + $0x20] sm:$0xff]
        %v467 = vld [vmem:[#allocation5 + $0x28] sm:$0xff]
        %v468 = vld [vmem:[#allocation5 + $0x30] sm:$0xff]
        %v469 = vld [vmem:[#allocation5 + $0x38] sm:$0xff]
        %v470 = vld [vmem:[#allocation5 + $0x40] sm:$0xff]
        %v471 = vld [vmem:[#allocation5 + $0x48] sm:$0xff]
        %v472 = vld [vmem:[#allocation5 + $0x50] sm:$0xff]
        %v473 = vld [vmem:[#allocation5 + $0x58] sm:$0xff]
        %v474 = vld [vmem:[#allocation5 + $0x60] sm:$0xff]
        %v475 = vld [vmem:[#allocation5 + $0x68] sm:$0xff]
        %v476 = vld [vmem:[#allocation5 + $0x70] sm:$0xff]
        %v477 = vld [vmem:[#allocation5 + $0x78] sm:$0xff]
        %v478 = vld [vmem:[#allocation5 + $0x80] sm:$0xff]
        %v479 = vld [vmem:[#allocation5 + $0x88] sm:$0xff]
        %v480 = vld [vmem:[#allocation5 + $0x90] sm:$0xff]
        %v481 = vld [vmem:[#allocation5 + $0x98] sm:$0xff]
        %v482 = vld [vmem:[#allocation5 + $0xa0] sm:$0xff]
        %v483 = vld [vmem:[#allocation5 + $0xa8] sm:$0xff]
        %v484 = vld [vmem:[#allocation5 + $0xb0] sm:$0xff]
        %v485 = vld [vmem:[#allocation5 + $0xb8] sm:$0xff]
        %v486 = vld [vmem:[#allocation5 + $0xc0] sm:$0xff]
        %v487 = vld [vmem:[#allocation5 + $0xc8] sm:$0xff]
        %v488 = vld [vmem:[#allocation5 + $0xd0] sm:$0xff]
        %v489 = vld [vmem:[#allocation5 + $0xd8] sm:$0xff]
        %v490 = vld [vmem:[#allocation5 + $0xe0] sm:$0xff]
        %v491 = vld [vmem:[#allocation5 + $0xe8] sm:$0xff]
        %v492 = vld [vmem:[#allocation5 + $0xf0] sm:$0xff]
        %v493 = vld [vmem:[#allocation5 + $0xf8] sm:$0xff]
        %v494 = vld [vmem:[#allocation5 + $0x100] sm:$0xff]
        %v495 = vld [vmem:[#allocation5 + $0x108] sm:$0xff]
        %v496 = vld [vmem:[#allocation5 + $0x110] sm:$0xff]
        %v497 = vld [vmem:[#allocation5 + $0x118] sm:$0xff]
        %v498 = vld [vmem:[#allocation5 + $0x120] sm:$0xff]
        %v499 = vld [vmem:[#allocation5 + $0x128] sm:$0xff]
        %v500 = vld [vmem:[#allocation5 + $0x130] sm:$0xff]
        %v501 = vld [vmem:[#allocation5 + $0x138] sm:$0xff]
        %v502 = vld [vmem:[#allocation5 + $0x140] sm:$0xff]
        %v503 = vld [vmem:[#allocation5 + $0x148] sm:$0xff]
        %v504 = vld [vmem:[#allocation5 + $0x150] sm:$0xff]
        %v505 = vld [vmem:[#allocation5 + $0x158] sm:$0xff]
        %v506 = vld [vmem:[#allocation5 + $0x160] sm:$0xff]
        %v507 = vld [vmem:[#allocation5 + $0x168] sm:$0xff]
        %v508 = vld [vmem:[#allocation5 + $0x170] sm:$0xff]
        %v509 = vld [vmem:[#allocation5 + $0x178] sm:$0xff]
        %v510 = vld [vmem:[#allocation5 + $0x180] sm:$0xff]
        %v511 = vld [vmem:[#allocation5 + $0x188] sm:$0xff]
        %v512 = vld [vmem:[#allocation5 + $0x190] sm:$0xff]
        %v513 = vld [vmem:[#allocation5 + $0x198] sm:$0xff]
        %v514 = vld [vmem:[#allocation5 + $0x1a0] sm:$0xff]
        %v515 = vld [vmem:[#allocation5 + $0x1a8] sm:$0xff]
        %v516 = vld [vmem:[#allocation5 + $0x1b0] sm:$0xff]
        %v517 = vld [vmem:[#allocation5 + $0x1b8] sm:$0xff]
        %v518 = vld [vmem:[#allocation5 + $0x1c0] sm:$0xff]
        %v519 = vld [vmem:[#allocation5 + $0x1c8] sm:$0xff]
        %v520 = vld [vmem:[#allocation5 + $0x1d0] sm:$0xff]
        %v521 = vld [vmem:[#allocation5 + $0x1d8] sm:$0xff]
        %v522 = vld [vmem:[#allocation5 + $0x1e0] sm:$0xff]
        %v523 = vld [vmem:[#allocation5 + $0x1e8] sm:$0xff]
        %v524 = vld [vmem:[#allocation5 + $0x1f0] sm:$0xff]
        %v525 = vld [vmem:[#allocation5 + $0x1f8] sm:$0xff]
        %v526 = vld [vmem:[#allocation7] sm:$0x3]
        %v528 = vperm.slane %v526, 0
        %v529 = vperm.slane %v526, 1
        %v596 = vunpack.c.l.b16 %v462
        %v597 = vunpack.c.h.b16 %v462
        %v598 = vunpack.c.l.b16 %v463
        %v599 = vunpack.c.h.b16 %v463
        %v600 = vunpack.c.l.b16 %v464
        %v601 = vunpack.c.h.b16 %v464
        %v602 = vunpack.c.l.b16 %v465
        %v603 = vunpack.c.h.b16 %v465
        %v604 = vunpack.c.l.b16 %v466
        %v605 = vunpack.c.h.b16 %v466
        %v606 = vunpack.c.l.b16 %v467
        %v607 = vunpack.c.h.b16 %v467
        %v608 = vunpack.c.l.b16 %v468
        %v609 = vunpack.c.h.b16 %v468
        %v610 = vunpack.c.l.b16 %v469
        %v611 = vunpack.c.h.b16 %v469
        %v612 = vunpack.c.l.b16 %v470
        %v613 = vunpack.c.h.b16 %v470
        %v614 = vunpack.c.l.b16 %v471
        %v615 = vunpack.c.h.b16 %v471
        %v616 = vunpack.c.l.b16 %v472
        %v617 = vunpack.c.h.b16 %v472
        %v618 = vunpack.c.l.b16 %v473
        %v619 = vunpack.c.h.b16 %v473
        %v620 = vunpack.c.l.b16 %v474
        %v621 = vunpack.c.h.b16 %v474
        %v622 = vunpack.c.l.b16 %v475
        %v623 = vunpack.c.h.b16 %v475
        %v624 = vunpack.c.l.b16 %v476
        %v625 = vunpack.c.h.b16 %v476
        %v626 = vunpack.c.l.b16 %v477
        %v627 = vunpack.c.h.b16 %v477
        %v628 = vunpack.c.l.b16 %v478
        %v629 = vunpack.c.h.b16 %v478
        %v630 = vunpack.c.l.b16 %v479
        %v631 = vunpack.c.h.b16 %v479
        %v632 = vunpack.c.l.b16 %v480
        %v633 = vunpack.c.h.b16 %v480
        %v634 = vunpack.c.l.b16 %v481
        %v635 = vunpack.c.h.b16 %v481
        %v636 = vunpack.c.l.b16 %v482
        %v637 = vunpack.c.h.b16 %v482
        %v638 = vunpack.c.l.b16 %v483
        %v639 = vunpack.c.h.b16 %v483
        %v640 = vunpack.c.l.b16 %v484
        %v641 = vunpack.c.h.b16 %v484
        %v642 = vunpack.c.l.b16 %v485
        %v643 = vunpack.c.h.b16 %v485
        %v644 = vunpack.c.l.b16 %v486
        %v645 = vunpack.c.h.b16 %v486
        %v646 = vunpack.c.l.b16 %v487
        %v647 = vunpack.c.h.b16 %v487
        %v648 = vunpack.c.l.b16 %v488
        %v649 = vunpack.c.h.b16 %v488
        %v650 = vunpack.c.l.b16 %v489
        %v651 = vunpack.c.h.b16 %v489
        %v652 = vunpack.c.l.b16 %v490
        %v653 = vunpack.c.h.b16 %v490
        %v654 = vunpack.c.l.b16 %v491
        %v655 = vunpack.c.h.b16 %v491
        %v656 = vunpack.c.l.b16 %v492
        %v657 = vunpack.c.h.b16 %v492
        %v658 = vunpack.c.l.b16 %v493
        %v659 = vunpack.c.h.b16 %v493
        %v660 = vunpack.c.l.b16 %v494
        %v661 = vunpack.c.h.b16 %v494
        %v662 = vunpack.c.l.b16 %v495
        %v663 = vunpack.c.h.b16 %v495
        %v664 = vunpack.c.l.b16 %v496
        %v665 = vunpack.c.h.b16 %v496
        %v666 = vunpack.c.l.b16 %v497
        %v667 = vunpack.c.h.b16 %v497
        %v668 = vunpack.c.l.b16 %v498
        %v669 = vunpack.c.h.b16 %v498
        %v670 = vunpack.c.l.b16 %v499
        %v671 = vunpack.c.h.b16 %v499
        %v672 = vunpack.c.l.b16 %v500
        %v673 = vunpack.c.h.b16 %v500
        %v674 = vunpack.c.l.b16 %v501
        %v675 = vunpack.c.h.b16 %v501
        %v676 = vunpack.c.l.b16 %v502
        %v677 = vunpack.c.h.b16 %v502
        %v678 = vunpack.c.l.b16 %v503
        %v679 = vunpack.c.h.b16 %v503
        %v680 = vunpack.c.l.b16 %v504
        %v681 = vunpack.c.h.b16 %v504
        %v682 = vunpack.c.l.b16 %v505
        %v683 = vunpack.c.h.b16 %v505
        %v684 = vunpack.c.l.b16 %v506
        %v685 = vunpack.c.h.b16 %v506
        %v686 = vunpack.c.l.b16 %v507
        %v687 = vunpack.c.h.b16 %v507
        %v688 = vunpack.c.l.b16 %v508
        %v689 = vunpack.c.h.b16 %v508
        %v690 = vunpack.c.l.b16 %v509
        %v691 = vunpack.c.h.b16 %v509
        %v692 = vunpack.c.l.b16 %v510
        %v693 = vunpack.c.h.b16 %v510
        %v694 = vunpack.c.l.b16 %v511
        %v695 = vunpack.c.h.b16 %v511
        %v696 = vunpack.c.l.b16 %v512
        %v697 = vunpack.c.h.b16 %v512
        %v698 = vunpack.c.l.b16 %v513
        %v699 = vunpack.c.h.b16 %v513
        %v700 = vunpack.c.l.b16 %v514
        %v701 = vunpack.c.h.b16 %v514
        %v702 = vunpack.c.l.b16 %v515
        %v703 = vunpack.c.h.b16 %v515
        %v704 = vunpack.c.l.b16 %v516
        %v705 = vunpack.c.h.b16 %v516
        %v706 = vunpack.c.l.b16 %v517
        %v707 = vunpack.c.h.b16 %v517
        %v708 = vunpack.c.l.b16 %v518
        %v709 = vunpack.c.h.b16 %v518
        %v710 = vunpack.c.l.b16 %v519
        %v711 = vunpack.c.h.b16 %v519
        %v712 = vunpack.c.l.b16 %v520
        %v713 = vunpack.c.h.b16 %v520
        %v714 = vunpack.c.l.b16 %v521
        %v715 = vunpack.c.h.b16 %v521
        %v716 = vunpack.c.l.b16 %v522
        %v717 = vunpack.c.h.b16 %v522
        %v718 = vunpack.c.l.b16 %v523
        %v719 = vunpack.c.h.b16 %v523
        %v720 = vunpack.c.l.b16 %v524
        %v721 = vunpack.c.h.b16 %v524
        %v722 = vunpack.c.l.b16 %v525
        %v723 = vunpack.c.h.b16 %v525
        %v724 = vpack.c.b16 %v598, %v596
        %v725 = vpack.c.b16 %v599, %v597
        %v726 = vpack.c.b16 %v602, %v600
        %v727 = vpack.c.b16 %v603, %v601
        %v728 = vpack.c.b16 %v606, %v604
        %v729 = vpack.c.b16 %v607, %v605
        %v730 = vpack.c.b16 %v610, %v608
        %v731 = vpack.c.b16 %v611, %v609
        %v732 = vpack.c.b16 %v614, %v612
        %v733 = vpack.c.b16 %v615, %v613
        %v734 = vpack.c.b16 %v618, %v616
        %v735 = vpack.c.b16 %v619, %v617
        %v736 = vpack.c.b16 %v622, %v620
        %v737 = vpack.c.b16 %v623, %v621
        %v738 = vpack.c.b16 %v626, %v624
        %v739 = vpack.c.b16 %v627, %v625
        %v740 = vpack.c.b16 %v630, %v628
        %v741 = vpack.c.b16 %v631, %v629
        %v742 = vpack.c.b16 %v634, %v632
        %v743 = vpack.c.b16 %v635, %v633
        %v744 = vpack.c.b16 %v638, %v636
        %v745 = vpack.c.b16 %v639, %v637
        %v746 = vpack.c.b16 %v642, %v640
        %v747 = vpack.c.b16 %v643, %v641
        %v748 = vpack.c.b16 %v646, %v644
        %v749 = vpack.c.b16 %v647, %v645
        %v750 = vpack.c.b16 %v650, %v648
        %v751 = vpack.c.b16 %v651, %v649
        %v752 = vpack.c.b16 %v654, %v652
        %v753 = vpack.c.b16 %v655, %v653
        %v754 = vpack.c.b16 %v658, %v656
        %v755 = vpack.c.b16 %v659, %v657
        %v756 = vpack.c.b16 %v662, %v660
        %v757 = vpack.c.b16 %v663, %v661
        %v758 = vpack.c.b16 %v666, %v664
        %v759 = vpack.c.b16 %v667, %v665
        %v760 = vpack.c.b16 %v670, %v668
        %v761 = vpack.c.b16 %v671, %v669
        %v762 = vpack.c.b16 %v674, %v672
        %v763 = vpack.c.b16 %v675, %v673
        %v764 = vpack.c.b16 %v678, %v676
        %v765 = vpack.c.b16 %v679, %v677
        %v766 = vpack.c.b16 %v682, %v680
        %v767 = vpack.c.b16 %v683, %v681
        %v768 = vpack.c.b16 %v686, %v684
        %v769 = vpack.c.b16 %v687, %v685
        %v770 = vpack.c.b16 %v690, %v688
        %v771 = vpack.c.b16 %v691, %v689
        %v772 = vpack.c.b16 %v694, %v692
        %v773 = vpack.c.b16 %v695, %v693
        %v774 = vpack.c.b16 %v698, %v696
        %v775 = vpack.c.b16 %v699, %v697
        %v776 = vpack.c.b16 %v702, %v700
        %v777 = vpack.c.b16 %v703, %v701
        %v778 = vpack.c.b16 %v706, %v704
        %v779 = vpack.c.b16 %v707, %v705
        %v780 = vpack.c.b16 %v710, %v708
        %v781 = vpack.c.b16 %v711, %v709
        %v782 = vpack.c.b16 %v714, %v712
        %v783 = vpack.c.b16 %v715, %v713
        %v784 = vpack.c.b16 %v718, %v716
        %v785 = vpack.c.b16 %v719, %v717
        %v786 = vpack.c.b16 %v722, %v720
        %v787 = vpack.c.b16 %v723, %v721
        %852 = vmatpush.bf16.msra.mxu0 %v738
        %853 = vmatpush.bf16.msra.mxu0 %v736
        %854 = vmatpush.bf16.msra.mxu0 %v734
        %855 = vmatpush.bf16.msra.mxu0 %v732
        %856 = vmatpush.bf16.msra.mxu0 %v730
        %857 = vmatpush.bf16.msra.mxu0 %v728
        %858 = vmatpush.bf16.msra.mxu0 %v726
        %859 = vmatpush.bf16.msra.mxu0 %v724
        %860 = vmatmul.bf16.gmra.mxu0 %v430
        %v861 = vpop.f32.mrf.mxu0
        %v862 = vadd.f32 %v528, %v861
        %v863 = vpop.f32.mrf.mxu0
        %v864 = vadd.f32 %v528, %v863
        %865 = vmatmul.bf16.gmra.mxu0 %v434
        %v866 = vpop.f32.mrf.mxu0
        %v867 = vadd.f32 %v528, %v866
        %v868 = vpop.f32.mrf.mxu0
        %v869 = vadd.f32 %v528, %v868
        %870 = vmatmul.bf16.gmra.mxu0 %v438
        %v871 = vpop.f32.mrf.mxu0
        %v872 = vadd.f32 %v528, %v871
        %v873 = vpop.f32.mrf.mxu0
        %v874 = vadd.f32 %v528, %v873
        %875 = vmatmul.bf16.gmra.mxu0 %v442
        %v876 = vpop.f32.mrf.mxu0
        %v877 = vadd.f32 %v528, %v876
        %v878 = vpop.f32.mrf.mxu0
        %v879 = vadd.f32 %v528, %v878
        %880 = vmatmul.bf16.gmra.mxu0 %v446
        %v881 = vpop.f32.mrf.mxu0
        %v882 = vadd.f32 %v528, %v881
        %v883 = vpop.f32.mrf.mxu0
        %v884 = vadd.f32 %v528, %v883
        %885 = vmatmul.bf16.gmra.mxu0 %v450
        %v886 = vpop.f32.mrf.mxu0
        %v887 = vadd.f32 %v528, %v886
        %v888 = vpop.f32.mrf.mxu0
        %v889 = vadd.f32 %v528, %v888
        %890 = vmatmul.bf16.gmra.mxu0 %v454
        %v891 = vpop.f32.mrf.mxu0
        %v892 = vadd.f32 %v528, %v891
        %v893 = vpop.f32.mrf.mxu0
        %v894 = vadd.f32 %v528, %v893
        %895 = vmatmul.bf16.gmra.mxu0 %v458
        %v896 = vpop.f32.mrf.mxu0
        %v897 = vadd.f32 %v528, %v896
        %v898 = vpop.f32.mrf.mxu0
        %v899 = vadd.f32 %v528, %v898
        %900 = vdwg.mxu0
        %901 = vmatpush.bf16.msra.mxu0 %v754
        %902 = vmatpush.bf16.msra.mxu0 %v752
        %903 = vmatpush.bf16.msra.mxu0 %v750
        %904 = vmatpush.bf16.msra.mxu0 %v748
        %905 = vmatpush.bf16.msra.mxu0 %v746
        %906 = vmatpush.bf16.msra.mxu0 %v744
        %907 = vmatpush.bf16.msra.mxu0 %v742
        %908 = vmatpush.bf16.msra.mxu0 %v740
        %909 = vmatmul.bf16.gmra.mxu0 %v431
        %v910 = vpop.f32.mrf.mxu0
        %v911 = vadd.f32 %v862, %v910
        %v912 = vpop.f32.mrf.mxu0
        %v913 = vadd.f32 %v864, %v912
        %914 = vmatmul.bf16.gmra.mxu0 %v435
        %v915 = vpop.f32.mrf.mxu0
        %v916 = vadd.f32 %v867, %v915
        %v917 = vpop.f32.mrf.mxu0
        %v918 = vadd.f32 %v869, %v917
        %919 = vmatmul.bf16.gmra.mxu0 %v439
        %v920 = vpop.f32.mrf.mxu0
        %v921 = vadd.f32 %v872, %v920
        %v922 = vpop.f32.mrf.mxu0
        %v923 = vadd.f32 %v874, %v922
        %924 = vmatmul.bf16.gmra.mxu0 %v443
        %v925 = vpop.f32.mrf.mxu0
        %v926 = vadd.f32 %v877, %v925
        %v927 = vpop.f32.mrf.mxu0
        %v928 = vadd.f32 %v879, %v927
        %929 = vmatmul.bf16.gmra.mxu0 %v447
        %v930 = vpop.f32.mrf.mxu0
        %v931 = vadd.f32 %v882, %v930
        %v932 = vpop.f32.mrf.mxu0
        %v933 = vadd.f32 %v884, %v932
        %934 = vmatmul.bf16.gmra.mxu0 %v451
        %v935 = vpop.f32.mrf.mxu0
        %v936 = vadd.f32 %v887, %v935
        %v937 = vpop.f32.mrf.mxu0
        %v938 = vadd.f32 %v889, %v937
        %939 = vmatmul.bf16.gmra.mxu0 %v455
        %v940 = vpop.f32.mrf.mxu0
        %v941 = vadd.f32 %v892, %v940
        %v942 = vpop.f32.mrf.mxu0
        %v943 = vadd.f32 %v894, %v942
        %944 = vmatmul.bf16.gmra.mxu0 %v459
        %v945 = vpop.f32.mrf.mxu0
        %v946 = vadd.f32 %v897, %v945
        %v947 = vpop.f32.mrf.mxu0
        %v948 = vadd.f32 %v899, %v947
        %949 = vdwg.mxu0
        %950 = vmatpush.bf16.msra.mxu0 %v770
        %951 = vmatpush.bf16.msra.mxu0 %v768
        %952 = vmatpush.bf16.msra.mxu0 %v766
        %953 = vmatpush.bf16.msra.mxu0 %v764
        %954 = vmatpush.bf16.msra.mxu0 %v762
        %955 = vmatpush.bf16.msra.mxu0 %v760
        %956 = vmatpush.bf16.msra.mxu0 %v758
        %957 = vmatpush.bf16.msra.mxu0 %v756
        %958 = vmatmul.bf16.gmra.mxu0 %v432
        %v959 = vpop.f32.mrf.mxu0
        %v960 = vadd.f32 %v911, %v959
        %v961 = vpop.f32.mrf.mxu0
        %v962 = vadd.f32 %v913, %v961
        %963 = vmatmul.bf16.gmra.mxu0 %v436
        %v964 = vpop.f32.mrf.mxu0
        %v965 = vadd.f32 %v916, %v964
        %v966 = vpop.f32.mrf.mxu0
        %v967 = vadd.f32 %v918, %v966
        %968 = vmatmul.bf16.gmra.mxu0 %v440
        %v969 = vpop.f32.mrf.mxu0
        %v970 = vadd.f32 %v921, %v969
        %v971 = vpop.f32.mrf.mxu0
        %v972 = vadd.f32 %v923, %v971
        %973 = vmatmul.bf16.gmra.mxu0 %v444
        %v974 = vpop.f32.mrf.mxu0
        %v975 = vadd.f32 %v926, %v974
        %v976 = vpop.f32.mrf.mxu0
        %v977 = vadd.f32 %v928, %v976
        %978 = vmatmul.bf16.gmra.mxu0 %v448
        %v979 = vpop.f32.mrf.mxu0
        %v980 = vadd.f32 %v931, %v979
        %v981 = vpop.f32.mrf.mxu0
        %v982 = vadd.f32 %v933, %v981
        %983 = vmatmul.bf16.gmra.mxu0 %v452
        %v984 = vpop.f32.mrf.mxu0
        %v985 = vadd.f32 %v936, %v984
        %v986 = vpop.f32.mrf.mxu0
        %v987 = vadd.f32 %v938, %v986
        %988 = vmatmul.bf16.gmra.mxu0 %v456
        %v989 = vpop.f32.mrf.mxu0
        %v990 = vadd.f32 %v941, %v989
        %v991 = vpop.f32.mrf.mxu0
        %v992 = vadd.f32 %v943, %v991
        %993 = vmatmul.bf16.gmra.mxu0 %v460
        %v994 = vpop.f32.mrf.mxu0
        %v995 = vadd.f32 %v946, %v994
        %v996 = vpop.f32.mrf.mxu0
        %v997 = vadd.f32 %v948, %v996
        %998 = vdwg.mxu0
        %999 = vmatpush.bf16.msra.mxu0 %v786
        %1000 = vmatpush.bf16.msra.mxu0 %v784
        %1001 = vmatpush.bf16.msra.mxu0 %v782
        %1002 = vmatpush.bf16.msra.mxu0 %v780
        %1003 = vmatpush.bf16.msra.mxu0 %v778
        %1004 = vmatpush.bf16.msra.mxu0 %v776
        %1005 = vmatpush.bf16.msra.mxu0 %v774
        %1006 = vmatpush.bf16.msra.mxu0 %v772
        %1007 = vmatmul.bf16.gmra.mxu0 %v433
        %v1008 = vpop.f32.mrf.mxu0
        %v1009 = vadd.f32 %v960, %v1008
        %v1010 = vpop.f32.mrf.mxu0
        %v1011 = vadd.f32 %v962, %v1010
        %1012 = vmatmul.bf16.gmra.mxu0 %v437
        %v1013 = vpop.f32.mrf.mxu0
        %v1014 = vadd.f32 %v965, %v1013
        %v1015 = vpop.f32.mrf.mxu0
        %v1016 = vadd.f32 %v967, %v1015
        %1017 = vmatmul.bf16.gmra.mxu0 %v441
        %v1018 = vpop.f32.mrf.mxu0
        %v1019 = vadd.f32 %v970, %v1018
        %v1020 = vpop.f32.mrf.mxu0
        %v1021 = vadd.f32 %v972, %v1020
        %1022 = vmatmul.bf16.gmra.mxu0 %v445
        %v1023 = vpop.f32.mrf.mxu0
        %v1024 = vadd.f32 %v975, %v1023
        %v1025 = vpop.f32.mrf.mxu0
        %v1026 = vadd.f32 %v977, %v1025
        %1027 = vmatmul.bf16.gmra.mxu0 %v449
        %v1028 = vpop.f32.mrf.mxu0
        %v1029 = vadd.f32 %v980, %v1028
        %v1030 = vpop.f32.mrf.mxu0
        %v1031 = vadd.f32 %v982, %v1030
        %1032 = vmatmul.bf16.gmra.mxu0 %v453
        %v1033 = vpop.f32.mrf.mxu0
        %v1034 = vadd.f32 %v985, %v1033
        %v1035 = vpop.f32.mrf.mxu0
        %v1036 = vadd.f32 %v987, %v1035
        %1037 = vmatmul.bf16.gmra.mxu0 %v457
        %v1038 = vpop.f32.mrf.mxu0
        %v1039 = vadd.f32 %v990, %v1038
        %v1040 = vpop.f32.mrf.mxu0
        %v1041 = vadd.f32 %v992, %v1040
        %1042 = vmatmul.bf16.gmra.mxu0 %v461
        %v1043 = vpop.f32.mrf.mxu0
        %v1044 = vadd.f32 %v995, %v1043
        %v1045 = vpop.f32.mrf.mxu0
        %v1046 = vadd.f32 %v997, %v1045
        %1047 = vdwg.mxu0
        %1048 = vmatpush.bf16.msra.mxu0 %v739
        %1049 = vmatpush.bf16.msra.mxu0 %v737
        %1050 = vmatpush.bf16.msra.mxu0 %v735
        %1051 = vmatpush.bf16.msra.mxu0 %v733
        %1052 = vmatpush.bf16.msra.mxu0 %v731
        %1053 = vmatpush.bf16.msra.mxu0 %v729
        %1054 = vmatpush.bf16.msra.mxu0 %v727
        %1055 = vmatpush.bf16.msra.mxu0 %v725
        %1056 = vmatmul.bf16.gmra.mxu0 %v430
        %v1057 = vpop.f32.mrf.mxu0
        %v1058 = vadd.f32 %v529, %v1057
        %v1059 = vpop.f32.mrf.mxu0
        %v1060 = vadd.f32 %v529, %v1059
        %1061 = vmatmul.bf16.gmra.mxu0 %v434
        %v1062 = vpop.f32.mrf.mxu0
        %v1063 = vadd.f32 %v529, %v1062
        %v1064 = vpop.f32.mrf.mxu0
        %v1065 = vadd.f32 %v529, %v1064
        %1066 = vmatmul.bf16.gmra.mxu0 %v438
        %v1067 = vpop.f32.mrf.mxu0
        %v1068 = vadd.f32 %v529, %v1067
        %v1069 = vpop.f32.mrf.mxu0
        %v1070 = vadd.f32 %v529, %v1069
        %1071 = vmatmul.bf16.gmra.mxu0 %v442
        %v1072 = vpop.f32.mrf.mxu0
        %v1073 = vadd.f32 %v529, %v1072
        %v1074 = vpop.f32.mrf.mxu0
        %v1075 = vadd.f32 %v529, %v1074
        %1076 = vmatmul.bf16.gmra.mxu0 %v446
        %v1077 = vpop.f32.mrf.mxu0
        %v1078 = vadd.f32 %v529, %v1077
        %v1079 = vpop.f32.mrf.mxu0
        %v1080 = vadd.f32 %v529, %v1079
        %1081 = vmatmul.bf16.gmra.mxu0 %v450
        %v1082 = vpop.f32.mrf.mxu0
        %v1083 = vadd.f32 %v529, %v1082
        %v1084 = vpop.f32.mrf.mxu0
        %v1085 = vadd.f32 %v529, %v1084
        %1086 = vmatmul.bf16.gmra.mxu0 %v454
        %v1087 = vpop.f32.mrf.mxu0
        %v1088 = vadd.f32 %v529, %v1087
        %v1089 = vpop.f32.mrf.mxu0
        %v1090 = vadd.f32 %v529, %v1089
        %1091 = vmatmul.bf16.gmra.mxu0 %v458
        %v1092 = vpop.f32.mrf.mxu0
        %v1093 = vadd.f32 %v529, %v1092
        %v1094 = vpop.f32.mrf.mxu0
        %v1095 = vadd.f32 %v529, %v1094
        %1096 = vdwg.mxu0
        %1097 = vmatpush.bf16.msra.mxu0 %v755
        %1098 = vmatpush.bf16.msra.mxu0 %v753
        %1099 = vmatpush.bf16.msra.mxu0 %v751
        %1100 = vmatpush.bf16.msra.mxu0 %v749
        %1101 = vmatpush.bf16.msra.mxu0 %v747
        %1102 = vmatpush.bf16.msra.mxu0 %v745
        %1103 = vmatpush.bf16.msra.mxu0 %v743
        %1104 = vmatpush.bf16.msra.mxu0 %v741
        %1105 = vmatmul.bf16.gmra.mxu0 %v431
        %v1106 = vpop.f32.mrf.mxu0
        %v1107 = vadd.f32 %v1058, %v1106
        %v1108 = vpop.f32.mrf.mxu0
        %v1109 = vadd.f32 %v1060, %v1108
        %1110 = vmatmul.bf16.gmra.mxu0 %v435
        %v1111 = vpop.f32.mrf.mxu0
        %v1112 = vadd.f32 %v1063, %v1111
        %v1113 = vpop.f32.mrf.mxu0
        %v1114 = vadd.f32 %v1065, %v1113
        %1115 = vmatmul.bf16.gmra.mxu0 %v439
        %v1116 = vpop.f32.mrf.mxu0
        %v1117 = vadd.f32 %v1068, %v1116
        %v1118 = vpop.f32.mrf.mxu0
        %v1119 = vadd.f32 %v1070, %v1118
        %1120 = vmatmul.bf16.gmra.mxu0 %v443
        %v1121 = vpop.f32.mrf.mxu0
        %v1122 = vadd.f32 %v1073, %v1121
        %v1123 = vpop.f32.mrf.mxu0
        %v1124 = vadd.f32 %v1075, %v1123
        %1125 = vmatmul.bf16.gmra.mxu0 %v447
        %v1126 = vpop.f32.mrf.mxu0
        %v1127 = vadd.f32 %v1078, %v1126
        %v1128 = vpop.f32.mrf.mxu0
        %v1129 = vadd.f32 %v1080, %v1128
        %1130 = vmatmul.bf16.gmra.mxu0 %v451
        %v1131 = vpop.f32.mrf.mxu0
        %v1132 = vadd.f32 %v1083, %v1131
        %v1133 = vpop.f32.mrf.mxu0
        %v1134 = vadd.f32 %v1085, %v1133
        %1135 = vmatmul.bf16.gmra.mxu0 %v455
        %v1136 = vpop.f32.mrf.mxu0
        %v1137 = vadd.f32 %v1088, %v1136
        %v1138 = vpop.f32.mrf.mxu0
        %v1139 = vadd.f32 %v1090, %v1138
        %1140 = vmatmul.bf16.gmra.mxu0 %v459
        %v1141 = vpop.f32.mrf.mxu0
        %v1142 = vadd.f32 %v1093, %v1141
        %v1143 = vpop.f32.mrf.mxu0
        %v1144 = vadd.f32 %v1095, %v1143
        %1145 = vdwg.mxu0
        %1146 = vmatpush.bf16.msra.mxu0 %v771
        %1147 = vmatpush.bf16.msra.mxu0 %v769
        %1148 = vmatpush.bf16.msra.mxu0 %v767
        %1149 = vmatpush.bf16.msra.mxu0 %v765
        %1150 = vmatpush.bf16.msra.mxu0 %v763
        %1151 = vmatpush.bf16.msra.mxu0 %v761
        %1152 = vmatpush.bf16.msra.mxu0 %v759
        %1153 = vmatpush.bf16.msra.mxu0 %v757
        %1154 = vmatmul.bf16.gmra.mxu0 %v432
        %v1155 = vpop.f32.mrf.mxu0
        %v1156 = vadd.f32 %v1107, %v1155
        %v1157 = vpop.f32.mrf.mxu0
        %v1158 = vadd.f32 %v1109, %v1157
        %1159 = vmatmul.bf16.gmra.mxu0 %v436
        %v1160 = vpop.f32.mrf.mxu0
        %v1161 = vadd.f32 %v1112, %v1160
        %v1162 = vpop.f32.mrf.mxu0
        %v1163 = vadd.f32 %v1114, %v1162
        %1164 = vmatmul.bf16.gmra.mxu0 %v440
        %v1165 = vpop.f32.mrf.mxu0
        %v1166 = vadd.f32 %v1117, %v1165
        %v1167 = vpop.f32.mrf.mxu0
        %v1168 = vadd.f32 %v1119, %v1167
        %1169 = vmatmul.bf16.gmra.mxu0 %v444
        %v1170 = vpop.f32.mrf.mxu0
        %v1171 = vadd.f32 %v1122, %v1170
        %v1172 = vpop.f32.mrf.mxu0
        %v1173 = vadd.f32 %v1124, %v1172
        %1174 = vmatmul.bf16.gmra.mxu0 %v448
        %v1175 = vpop.f32.mrf.mxu0
        %v1176 = vadd.f32 %v1127, %v1175
        %v1177 = vpop.f32.mrf.mxu0
        %v1178 = vadd.f32 %v1129, %v1177
        %1179 = vmatmul.bf16.gmra.mxu0 %v452
        %v1180 = vpop.f32.mrf.mxu0
        %v1181 = vadd.f32 %v1132, %v1180
        %v1182 = vpop.f32.mrf.mxu0
        %v1183 = vadd.f32 %v1134, %v1182
        %1184 = vmatmul.bf16.gmra.mxu0 %v456
        %v1185 = vpop.f32.mrf.mxu0
        %v1186 = vadd.f32 %v1137, %v1185
        %v1187 = vpop.f32.mrf.mxu0
        %v1188 = vadd.f32 %v1139, %v1187
        %1189 = vmatmul.bf16.gmra.mxu0 %v460
        %v1190 = vpop.f32.mrf.mxu0
        %v1191 = vadd.f32 %v1142, %v1190
        %v1192 = vpop.f32.mrf.mxu0
        %v1193 = vadd.f32 %v1144, %v1192
        %1194 = vdwg.mxu0
        %1195 = vmatpush.bf16.msra.mxu0 %v787
        %1196 = vmatpush.bf16.msra.mxu0 %v785
        %1197 = vmatpush.bf16.msra.mxu0 %v783
        %1198 = vmatpush.bf16.msra.mxu0 %v781
        %1199 = vmatpush.bf16.msra.mxu0 %v779
        %1200 = vmatpush.bf16.msra.mxu0 %v777
        %1201 = vmatpush.bf16.msra.mxu0 %v775
        %1202 = vmatpush.bf16.msra.mxu0 %v773
        %1203 = vmatmul.bf16.gmra.mxu0 %v433
        %v1204 = vpop.f32.mrf.mxu0
        %v1205 = vadd.f32 %v1156, %v1204
        %v1206 = vpop.f32.mrf.mxu0
        %v1207 = vadd.f32 %v1158, %v1206
        %1208 = vmatmul.bf16.gmra.mxu0 %v437
        %v1209 = vpop.f32.mrf.mxu0
        %v1210 = vadd.f32 %v1161, %v1209
        %v1211 = vpop.f32.mrf.mxu0
        %v1212 = vadd.f32 %v1163, %v1211
        %1213 = vmatmul.bf16.gmra.mxu0 %v441
        %v1214 = vpop.f32.mrf.mxu0
        %v1215 = vadd.f32 %v1166, %v1214
        %v1216 = vpop.f32.mrf.mxu0
        %v1217 = vadd.f32 %v1168, %v1216
        %1218 = vmatmul.bf16.gmra.mxu0 %v445
        %v1219 = vpop.f32.mrf.mxu0
        %v1220 = vadd.f32 %v1171, %v1219
        %v1221 = vpop.f32.mrf.mxu0
        %v1222 = vadd.f32 %v1173, %v1221
        %1223 = vmatmul.bf16.gmra.mxu0 %v449
        %v1224 = vpop.f32.mrf.mxu0
        %v1225 = vadd.f32 %v1176, %v1224
        %v1226 = vpop.f32.mrf.mxu0
        %v1227 = vadd.f32 %v1178, %v1226
        %1228 = vmatmul.bf16.gmra.mxu0 %v453
        %v1229 = vpop.f32.mrf.mxu0
        %v1230 = vadd.f32 %v1181, %v1229
        %v1231 = vpop.f32.mrf.mxu0
        %v1232 = vadd.f32 %v1183, %v1231
        %1233 = vmatmul.bf16.gmra.mxu0 %v457
        %v1234 = vpop.f32.mrf.mxu0
        %v1235 = vadd.f32 %v1186, %v1234
        %v1236 = vpop.f32.mrf.mxu0
        %v1237 = vadd.f32 %v1188, %v1236
        %1238 = vmatmul.bf16.gmra.mxu0 %v461
        %v1239 = vpop.f32.mrf.mxu0
        %v1240 = vadd.f32 %v1191, %v1239
        %v1241 = vpop.f32.mrf.mxu0
        %v1242 = vadd.f32 %v1193, %v1241
        %1243 = vdwg.mxu0
        %v1244 = vmax.f32 %v1009, 0.0
        %v1245 = vmax.f32 %v1205, 0.0
        %v1246 = vmax.f32 %v1011, 0.0
        %v1247 = vmax.f32 %v1207, 0.0
        %v1248 = vmax.f32 %v1014, 0.0
        %v1249 = vmax.f32 %v1210, 0.0
        %v1250 = vmax.f32 %v1016, 0.0
        %v1251 = vmax.f32 %v1212, 0.0
        %v1252 = vmax.f32 %v1019, 0.0
        %v1253 = vmax.f32 %v1215, 0.0
        %v1254 = vmax.f32 %v1021, 0.0
        %v1255 = vmax.f32 %v1217, 0.0
        %v1256 = vmax.f32 %v1024, 0.0
        %v1257 = vmax.f32 %v1220, 0.0
        %v1258 = vmax.f32 %v1026, 0.0
        %v1259 = vmax.f32 %v1222, 0.0
        %v1260 = vmax.f32 %v1029, 0.0
        %v1261 = vmax.f32 %v1225, 0.0
        %v1262 = vmax.f32 %v1031, 0.0
        %v1263 = vmax.f32 %v1227, 0.0
        %v1264 = vmax.f32 %v1034, 0.0
        %v1265 = vmax.f32 %v1230, 0.0
        %v1266 = vmax.f32 %v1036, 0.0
        %v1267 = vmax.f32 %v1232, 0.0
        %v1268 = vmax.f32 %v1039, 0.0
        %v1269 = vmax.f32 %v1235, 0.0
        %v1270 = vmax.f32 %v1041, 0.0
        %v1271 = vmax.f32 %v1237, 0.0
        %v1272 = vmax.f32 %v1044, 0.0
        %v1273 = vmax.f32 %v1240, 0.0
        %v1274 = vmax.f32 %v1046, 0.0
        %v1275 = vmax.f32 %v1242, 0.0
        %v1276 = vpack.c.bf16 %v1246, %v1244
        %v1277 = vpack.c.bf16 %v1247, %v1245
        %v1278 = vpack.c.bf16 %v1250, %v1248
        %v1279 = vpack.c.bf16 %v1251, %v1249
        %v1280 = vpack.c.bf16 %v1254, %v1252
        %v1281 = vpack.c.bf16 %v1255, %v1253
        %v1282 = vpack.c.bf16 %v1258, %v1256
        %v1283 = vpack.c.bf16 %v1259, %v1257
        %v1284 = vpack.c.bf16 %v1262, %v1260
        %v1285 = vpack.c.bf16 %v1263, %v1261
        %v1286 = vpack.c.bf16 %v1266, %v1264
        %v1287 = vpack.c.bf16 %v1267, %v1265
        %v1288 = vpack.c.bf16 %v1270, %v1268
        %v1289 = vpack.c.bf16 %v1271, %v1269
        %v1290 = vpack.c.bf16 %v1274, %v1272
        %v1291 = vpack.c.bf16 %v1275, %v1273
        %v1292 = vld [vmem:[#allocation8] sm:$0xff]
        %v1293 = vld [vmem:[#allocation8 + $0x8] sm:$0xff]
        %v1294 = vld [vmem:[#allocation8 + $0x10] sm:$0xff]
        %v1295 = vld [vmem:[#allocation8 + $0x18] sm:$0xff]
        %v1296 = vld [vmem:[#allocation8 + $0x20] sm:$0xff]
        %v1297 = vld [vmem:[#allocation8 + $0x28] sm:$0xff]
        %v1298 = vld [vmem:[#allocation8 + $0x30] sm:$0xff]
        %v1299 = vld [vmem:[#allocation8 + $0x38] sm:$0xff]
        %v1300 = vld [vmem:[#allocation8 + $0x40] sm:$0xff]
        %v1301 = vld [vmem:[#allocation8 + $0x48] sm:$0xff]
        %v1302 = vld [vmem:[#allocation8 + $0x50] sm:$0xff]
        %v1303 = vld [vmem:[#allocation8 + $0x58] sm:$0xff]
        %v1304 = vld [vmem:[#allocation8 + $0x60] sm:$0xff]
        %v1305 = vld [vmem:[#allocation8 + $0x68] sm:$0xff]
        %v1306 = vld [vmem:[#allocation8 + $0x70] sm:$0xff]
        %v1307 = vld [vmem:[#allocation8 + $0x78] sm:$0xff]
        %v1308 = vld [vmem:[#allocation8 + $0x80] sm:$0xff]
        %v1309 = vld [vmem:[#allocation8 + $0x88] sm:$0xff]
        %v1310 = vld [vmem:[#allocation8 + $0x90] sm:$0xff]
        %v1311 = vld [vmem:[#allocation8 + $0x98] sm:$0xff]
        %v1312 = vld [vmem:[#allocation8 + $0xa0] sm:$0xff]
        %v1313 = vld [vmem:[#allocation8 + $0xa8] sm:$0xff]
        %v1314 = vld [vmem:[#allocation8 + $0xb0] sm:$0xff]
        %v1315 = vld [vmem:[#allocation8 + $0xb8] sm:$0xff]
        %v1316 = vld [vmem:[#allocation8 + $0xc0] sm:$0xff]
        %v1317 = vld [vmem:[#allocation8 + $0xc8] sm:$0xff]
        %v1318 = vld [vmem:[#allocation8 + $0xd0] sm:$0xff]
        %v1319 = vld [vmem:[#allocation8 + $0xd8] sm:$0xff]
        %v1320 = vld [vmem:[#allocation8 + $0xe0] sm:$0xff]
        %v1321 = vld [vmem:[#allocation8 + $0xe8] sm:$0xff]
        %v1322 = vld [vmem:[#allocation8 + $0xf0] sm:$0xff]
        %v1323 = vld [vmem:[#allocation8 + $0xf8] sm:$0xff]
        %v1324 = vld [vmem:[%s4] sm:$0x3]
        %v1326 = vperm.slane %v1324, 0
        %v1327 = vperm.slane %v1324, 1
        %v1362 = vunpack.c.l.b16 %v1292
        %v1363 = vunpack.c.h.b16 %v1292
        %v1364 = vunpack.c.l.b16 %v1293
        %v1365 = vunpack.c.h.b16 %v1293
        %v1366 = vunpack.c.l.b16 %v1294
        %v1367 = vunpack.c.h.b16 %v1294
        %v1368 = vunpack.c.l.b16 %v1295
        %v1369 = vunpack.c.h.b16 %v1295
        %v1370 = vunpack.c.l.b16 %v1296
        %v1371 = vunpack.c.h.b16 %v1296
        %v1372 = vunpack.c.l.b16 %v1297
        %v1373 = vunpack.c.h.b16 %v1297
        %v1374 = vunpack.c.l.b16 %v1298
        %v1375 = vunpack.c.h.b16 %v1298
        %v1376 = vunpack.c.l.b16 %v1299
        %v1377 = vunpack.c.h.b16 %v1299
        %v1378 = vunpack.c.l.b16 %v1300
        %v1379 = vunpack.c.h.b16 %v1300
        %v1380 = vunpack.c.l.b16 %v1301
        %v1381 = vunpack.c.h.b16 %v1301
        %v1382 = vunpack.c.l.b16 %v1302
        %v1383 = vunpack.c.h.b16 %v1302
        %v1384 = vunpack.c.l.b16 %v1303
        %v1385 = vunpack.c.h.b16 %v1303
        %v1386 = vunpack.c.l.b16 %v1304
        %v1387 = vunpack.c.h.b16 %v1304
        %v1388 = vunpack.c.l.b16 %v1305
        %v1389 = vunpack.c.h.b16 %v1305
        %v1390 = vunpack.c.l.b16 %v1306
        %v1391 = vunpack.c.h.b16 %v1306
        %v1392 = vunpack.c.l.b16 %v1307
        %v1393 = vunpack.c.h.b16 %v1307
        %v1394 = vunpack.c.l.b16 %v1308
        %v1395 = vunpack.c.h.b16 %v1308
        %v1396 = vunpack.c.l.b16 %v1309
        %v1397 = vunpack.c.h.b16 %v1309
        %v1398 = vunpack.c.l.b16 %v1310
        %v1399 = vunpack.c.h.b16 %v1310
        %v1400 = vunpack.c.l.b16 %v1311
        %v1401 = vunpack.c.h.b16 %v1311
        %v1402 = vunpack.c.l.b16 %v1312
        %v1403 = vunpack.c.h.b16 %v1312
        %v1404 = vunpack.c.l.b16 %v1313
        %v1405 = vunpack.c.h.b16 %v1313
        %v1406 = vunpack.c.l.b16 %v1314
        %v1407 = vunpack.c.h.b16 %v1314
        %v1408 = vunpack.c.l.b16 %v1315
        %v1409 = vunpack.c.h.b16 %v1315
        %v1410 = vunpack.c.l.b16 %v1316
        %v1411 = vunpack.c.h.b16 %v1316
        %v1412 = vunpack.c.l.b16 %v1317
        %v1413 = vunpack.c.h.b16 %v1317
        %v1414 = vunpack.c.l.b16 %v1318
        %v1415 = vunpack.c.h.b16 %v1318
        %v1416 = vunpack.c.l.b16 %v1319
        %v1417 = vunpack.c.h.b16 %v1319
        %v1418 = vunpack.c.l.b16 %v1320
        %v1419 = vunpack.c.h.b16 %v1320
        %v1420 = vunpack.c.l.b16 %v1321
        %v1421 = vunpack.c.h.b16 %v1321
        %v1422 = vunpack.c.l.b16 %v1322
        %v1423 = vunpack.c.h.b16 %v1322
        %v1424 = vunpack.c.l.b16 %v1323
        %v1425 = vunpack.c.h.b16 %v1323
        %v1426 = vpack.c.b16 %v1364, %v1362
        %v1427 = vpack.c.b16 %v1365, %v1363
        %v1428 = vpack.c.b16 %v1368, %v1366
        %v1429 = vpack.c.b16 %v1369, %v1367
        %v1430 = vpack.c.b16 %v1372, %v1370
        %v1431 = vpack.c.b16 %v1373, %v1371
        %v1432 = vpack.c.b16 %v1376, %v1374
        %v1433 = vpack.c.b16 %v1377, %v1375
        %v1434 = vpack.c.b16 %v1380, %v1378
        %v1435 = vpack.c.b16 %v1381, %v1379
        %v1436 = vpack.c.b16 %v1384, %v1382
        %v1437 = vpack.c.b16 %v1385, %v1383
        %v1438 = vpack.c.b16 %v1388, %v1386
        %v1439 = vpack.c.b16 %v1389, %v1387
        %v1440 = vpack.c.b16 %v1392, %v1390
        %v1441 = vpack.c.b16 %v1393, %v1391
        %v1442 = vpack.c.b16 %v1396, %v1394
        %v1443 = vpack.c.b16 %v1397, %v1395
        %v1444 = vpack.c.b16 %v1400, %v1398
        %v1445 = vpack.c.b16 %v1401, %v1399
        %v1446 = vpack.c.b16 %v1404, %v1402
        %v1447 = vpack.c.b16 %v1405, %v1403
        %v1448 = vpack.c.b16 %v1408, %v1406
        %v1449 = vpack.c.b16 %v1409, %v1407
        %v1450 = vpack.c.b16 %v1412, %v1410
        %v1451 = vpack.c.b16 %v1413, %v1411
        %v1452 = vpack.c.b16 %v1416, %v1414
        %v1453 = vpack.c.b16 %v1417, %v1415
        %v1454 = vpack.c.b16 %v1420, %v1418
        %v1455 = vpack.c.b16 %v1421, %v1419
        %v1456 = vpack.c.b16 %v1424, %v1422
        %v1457 = vpack.c.b16 %v1425, %v1423
        %1490 = vmatpush.bf16.msra.mxu0 %v1440
        %1491 = vmatpush.bf16.msra.mxu0 %v1438
        %1492 = vmatpush.bf16.msra.mxu0 %v1436
        %1493 = vmatpush.bf16.msra.mxu0 %v1434
        %1494 = vmatpush.bf16.msra.mxu0 %v1432
        %1495 = vmatpush.bf16.msra.mxu0 %v1430
        %1496 = vmatpush.bf16.msra.mxu0 %v1428
        %1497 = vmatpush.bf16.msra.mxu0 %v1426
        %1498 = vmatmul.bf16.gmra.mxu0 %v1276
        %v1499 = vpop.f32.mrf.mxu0
        %v1500 = vadd.f32 %v1326, %v1499
        %v1501 = vpop.f32.mrf.mxu0
        %v1502 = vadd.f32 %v1326, %v1501
        %1503 = vmatmul.bf16.gmra.mxu0 %v1278
        %v1504 = vpop.f32.mrf.mxu0
        %v1505 = vadd.f32 %v1326, %v1504
        %v1506 = vpop.f32.mrf.mxu0
        %v1507 = vadd.f32 %v1326, %v1506
        %1508 = vmatmul.bf16.gmra.mxu0 %v1280
        %v1509 = vpop.f32.mrf.mxu0
        %v1510 = vadd.f32 %v1326, %v1509
        %v1511 = vpop.f32.mrf.mxu0
        %v1512 = vadd.f32 %v1326, %v1511
        %1513 = vmatmul.bf16.gmra.mxu0 %v1282
        %v1514 = vpop.f32.mrf.mxu0
        %v1515 = vadd.f32 %v1326, %v1514
        %v1516 = vpop.f32.mrf.mxu0
        %v1517 = vadd.f32 %v1326, %v1516
        %1518 = vmatmul.bf16.gmra.mxu0 %v1284
        %v1519 = vpop.f32.mrf.mxu0
        %v1520 = vadd.f32 %v1326, %v1519
        %v1521 = vpop.f32.mrf.mxu0
        %v1522 = vadd.f32 %v1326, %v1521
        %1523 = vmatmul.bf16.gmra.mxu0 %v1286
        %v1524 = vpop.f32.mrf.mxu0
        %v1525 = vadd.f32 %v1326, %v1524
        %v1526 = vpop.f32.mrf.mxu0
        %v1527 = vadd.f32 %v1326, %v1526
        %1528 = vmatmul.bf16.gmra.mxu0 %v1288
        %v1529 = vpop.f32.mrf.mxu0
        %v1530 = vadd.f32 %v1326, %v1529
        %v1531 = vpop.f32.mrf.mxu0
        %v1532 = vadd.f32 %v1326, %v1531
        %1533 = vmatmul.bf16.gmra.mxu0 %v1290
        %v1534 = vpop.f32.mrf.mxu0
        %v1535 = vadd.f32 %v1326, %v1534
        %v1536 = vpop.f32.mrf.mxu0
        %v1537 = vadd.f32 %v1326, %v1536
        %1538 = vdwg.mxu0
        %1539 = vmatpush.bf16.msra.mxu0 %v1456
        %1540 = vmatpush.bf16.msra.mxu0 %v1454
        %1541 = vmatpush.bf16.msra.mxu0 %v1452
        %1542 = vmatpush.bf16.msra.mxu0 %v1450
        %1543 = vmatpush.bf16.msra.mxu0 %v1448
        %1544 = vmatpush.bf16.msra.mxu0 %v1446
        %1545 = vmatpush.bf16.msra.mxu0 %v1444
        %1546 = vmatpush.bf16.msra.mxu0 %v1442
        %1547 = vmatmul.bf16.gmra.mxu0 %v1277
        %v1548 = vpop.f32.mrf.mxu0
        %v1549 = vadd.f32 %v1500, %v1548
        %v1550 = vpop.f32.mrf.mxu0
        %v1551 = vadd.f32 %v1502, %v1550
        %1552 = vmatmul.bf16.gmra.mxu0 %v1279
        %v1553 = vpop.f32.mrf.mxu0
        %v1554 = vadd.f32 %v1505, %v1553
        %v1555 = vpop.f32.mrf.mxu0
        %v1556 = vadd.f32 %v1507, %v1555
        %1557 = vmatmul.bf16.gmra.mxu0 %v1281
        %v1558 = vpop.f32.mrf.mxu0
        %v1559 = vadd.f32 %v1510, %v1558
        %v1560 = vpop.f32.mrf.mxu0
        %v1561 = vadd.f32 %v1512, %v1560
        %1562 = vmatmul.bf16.gmra.mxu0 %v1283
        %v1563 = vpop.f32.mrf.mxu0
        %v1564 = vadd.f32 %v1515, %v1563
        %v1565 = vpop.f32.mrf.mxu0
        %v1566 = vadd.f32 %v1517, %v1565
        %1567 = vmatmul.bf16.gmra.mxu0 %v1285
        %v1568 = vpop.f32.mrf.mxu0
        %v1569 = vadd.f32 %v1520, %v1568
        %v1570 = vpop.f32.mrf.mxu0
        %v1571 = vadd.f32 %v1522, %v1570
        %1572 = vmatmul.bf16.gmra.mxu0 %v1287
        %v1573 = vpop.f32.mrf.mxu0
        %v1574 = vadd.f32 %v1525, %v1573
        %v1575 = vpop.f32.mrf.mxu0
        %v1576 = vadd.f32 %v1527, %v1575
        %1577 = vmatmul.bf16.gmra.mxu0 %v1289
        %v1578 = vpop.f32.mrf.mxu0
        %v1579 = vadd.f32 %v1530, %v1578
        %v1580 = vpop.f32.mrf.mxu0
        %v1581 = vadd.f32 %v1532, %v1580
        %1582 = vmatmul.bf16.gmra.mxu0 %v1291
        %v1583 = vpop.f32.mrf.mxu0
        %v1584 = vadd.f32 %v1535, %v1583
        %v1585 = vpop.f32.mrf.mxu0
        %v1586 = vadd.f32 %v1537, %v1585
        %1587 = vdwg.mxu0
        %1588 = vmatpush.bf16.msra.mxu0 %v1441
        %1589 = vmatpush.bf16.msra.mxu0 %v1439
        %1590 = vmatpush.bf16.msra.mxu0 %v1437
        %1591 = vmatpush.bf16.msra.mxu0 %v1435
        %1592 = vmatpush.bf16.msra.mxu0 %v1433
        %1593 = vmatpush.bf16.msra.mxu0 %v1431
        %1594 = vmatpush.bf16.msra.mxu0 %v1429
        %1595 = vmatpush.bf16.msra.mxu0 %v1427
        %1596 = vmatmul.bf16.gmra.mxu0 %v1276
        %v1597 = vpop.f32.mrf.mxu0
        %v1598 = vadd.f32 %v1327, %v1597
        %v1599 = vpop.f32.mrf.mxu0
        %v1600 = vadd.f32 %v1327, %v1599
        %1601 = vmatmul.bf16.gmra.mxu0 %v1278
        %v1602 = vpop.f32.mrf.mxu0
        %v1603 = vadd.f32 %v1327, %v1602
        %v1604 = vpop.f32.mrf.mxu0
        %v1605 = vadd.f32 %v1327, %v1604
        %1606 = vmatmul.bf16.gmra.mxu0 %v1280
        %v1607 = vpop.f32.mrf.mxu0
        %v1608 = vadd.f32 %v1327, %v1607
        %v1609 = vpop.f32.mrf.mxu0
        %v1610 = vadd.f32 %v1327, %v1609
        %1611 = vmatmul.bf16.gmra.mxu0 %v1282
        %v1612 = vpop.f32.mrf.mxu0
        %v1613 = vadd.f32 %v1327, %v1612
        %v1614 = vpop.f32.mrf.mxu0
        %v1615 = vadd.f32 %v1327, %v1614
        %1616 = vmatmul.bf16.gmra.mxu0 %v1284
        %v1617 = vpop.f32.mrf.mxu0
        %v1618 = vadd.f32 %v1327, %v1617
        %v1619 = vpop.f32.mrf.mxu0
        %v1620 = vadd.f32 %v1327, %v1619
        %1621 = vmatmul.bf16.gmra.mxu0 %v1286
        %v1622 = vpop.f32.mrf.mxu0
        %v1623 = vadd.f32 %v1327, %v1622
        %v1624 = vpop.f32.mrf.mxu0
        %v1625 = vadd.f32 %v1327, %v1624
        %1626 = vmatmul.bf16.gmra.mxu0 %v1288
        %v1627 = vpop.f32.mrf.mxu0
        %v1628 = vadd.f32 %v1327, %v1627
        %v1629 = vpop.f32.mrf.mxu0
        %v1630 = vadd.f32 %v1327, %v1629
        %1631 = vmatmul.bf16.gmra.mxu0 %v1290
        %v1632 = vpop.f32.mrf.mxu0
        %v1633 = vadd.f32 %v1327, %v1632
        %v1634 = vpop.f32.mrf.mxu0
        %v1635 = vadd.f32 %v1327, %v1634
        %1636 = vdwg.mxu0
        %1637 = vmatpush.bf16.msra.mxu0 %v1457
        %1638 = vmatpush.bf16.msra.mxu0 %v1455
        %1639 = vmatpush.bf16.msra.mxu0 %v1453
        %1640 = vmatpush.bf16.msra.mxu0 %v1451
        %1641 = vmatpush.bf16.msra.mxu0 %v1449
        %1642 = vmatpush.bf16.msra.mxu0 %v1447
        %1643 = vmatpush.bf16.msra.mxu0 %v1445
        %1644 = vmatpush.bf16.msra.mxu0 %v1443
        %1645 = vmatmul.bf16.gmra.mxu0 %v1277
        %v1646 = vpop.f32.mrf.mxu0
        %v1647 = vadd.f32 %v1598, %v1646
        %v1648 = vpop.f32.mrf.mxu0
        %v1649 = vadd.f32 %v1600, %v1648
        %1650 = vmatmul.bf16.gmra.mxu0 %v1279
        %v1651 = vpop.f32.mrf.mxu0
        %v1652 = vadd.f32 %v1603, %v1651
        %v1653 = vpop.f32.mrf.mxu0
        %v1654 = vadd.f32 %v1605, %v1653
        %1655 = vmatmul.bf16.gmra.mxu0 %v1281
        %v1656 = vpop.f32.mrf.mxu0
        %v1657 = vadd.f32 %v1608, %v1656
        %v1658 = vpop.f32.mrf.mxu0
        %v1659 = vadd.f32 %v1610, %v1658
        %1660 = vmatmul.bf16.gmra.mxu0 %v1283
        %v1661 = vpop.f32.mrf.mxu0
        %v1662 = vadd.f32 %v1613, %v1661
        %v1663 = vpop.f32.mrf.mxu0
        %v1664 = vadd.f32 %v1615, %v1663
        %1665 = vmatmul.bf16.gmra.mxu0 %v1285
        %v1666 = vpop.f32.mrf.mxu0
        %v1667 = vadd.f32 %v1618, %v1666
        %v1668 = vpop.f32.mrf.mxu0
        %v1669 = vadd.f32 %v1620, %v1668
        %1670 = vmatmul.bf16.gmra.mxu0 %v1287
        %v1671 = vpop.f32.mrf.mxu0
        %v1672 = vadd.f32 %v1623, %v1671
        %v1673 = vpop.f32.mrf.mxu0
        %v1674 = vadd.f32 %v1625, %v1673
        %1675 = vmatmul.bf16.gmra.mxu0 %v1289
        %v1676 = vpop.f32.mrf.mxu0
        %v1677 = vadd.f32 %v1628, %v1676
        %v1678 = vpop.f32.mrf.mxu0
        %v1679 = vadd.f32 %v1630, %v1678
        %1680 = vmatmul.bf16.gmra.mxu0 %v1291
        %v1681 = vpop.f32.mrf.mxu0
        %v1682 = vadd.f32 %v1633, %v1681
        %v1683 = vpop.f32.mrf.mxu0
        %v1684 = vadd.f32 %v1635, %v1683
        %1685 = vdwg.mxu0
        %v1686 = vmax.f32 %v1549, 0.0
        %v1687 = vmax.f32 %v1647, 0.0
        %v1688 = vmax.f32 %v1551, 0.0
        %v1689 = vmax.f32 %v1649, 0.0
        %v1690 = vmax.f32 %v1554, 0.0
        %v1691 = vmax.f32 %v1652, 0.0
        %v1692 = vmax.f32 %v1556, 0.0
        %v1693 = vmax.f32 %v1654, 0.0
        %v1694 = vmax.f32 %v1559, 0.0
        %v1695 = vmax.f32 %v1657, 0.0
        %v1696 = vmax.f32 %v1561, 0.0
        %v1697 = vmax.f32 %v1659, 0.0
        %v1698 = vmax.f32 %v1564, 0.0
        %v1699 = vmax.f32 %v1662, 0.0
        %v1700 = vmax.f32 %v1566, 0.0
        %v1701 = vmax.f32 %v1664, 0.0
        %v1702 = vmax.f32 %v1569, 0.0
        %v1703 = vmax.f32 %v1667, 0.0
        %v1704 = vmax.f32 %v1571, 0.0
        %v1705 = vmax.f32 %v1669, 0.0
        %v1706 = vmax.f32 %v1574, 0.0
        %v1707 = vmax.f32 %v1672, 0.0
        %v1708 = vmax.f32 %v1576, 0.0
        %v1709 = vmax.f32 %v1674, 0.0
        %v1710 = vmax.f32 %v1579, 0.0
        %v1711 = vmax.f32 %v1677, 0.0
        %v1712 = vmax.f32 %v1581, 0.0
        %v1713 = vmax.f32 %v1679, 0.0
        %v1714 = vmax.f32 %v1584, 0.0
        %v1715 = vmax.f32 %v1682, 0.0
        %v1716 = vmax.f32 %v1586, 0.0
        %v1717 = vmax.f32 %v1684, 0.0
        %v1718 = vpack.c.bf16 %v1688, %v1686
        %v1719 = vpack.c.bf16 %v1689, %v1687
        %v1720 = vpack.c.bf16 %v1692, %v1690
        %v1721 = vpack.c.bf16 %v1693, %v1691
        %v1722 = vpack.c.bf16 %v1696, %v1694
        %v1723 = vpack.c.bf16 %v1697, %v1695
        %v1724 = vpack.c.bf16 %v1700, %v1698
        %v1725 = vpack.c.bf16 %v1701, %v1699
        %v1726 = vpack.c.bf16 %v1704, %v1702
        %v1727 = vpack.c.bf16 %v1705, %v1703
        %v1728 = vpack.c.bf16 %v1708, %v1706
        %v1729 = vpack.c.bf16 %v1709, %v1707
        %v1730 = vpack.c.bf16 %v1712, %v1710
        %v1731 = vpack.c.bf16 %v1713, %v1711
        %v1732 = vpack.c.bf16 %v1716, %v1714
        %v1733 = vpack.c.bf16 %v1717, %v1715
        %v1734 = vld [vmem:[#allocation10] sm:$0xf]
        %v1735 = vld [vmem:[#allocation10 + $0x4] sm:$0xf]
        %v1736 = vld [vmem:[#allocation10 + $0x8] sm:$0xf]
        %v1737 = vld [vmem:[#allocation10 + $0xc] sm:$0xf]
        %v1738 = vld [vmem:[#allocation10 + $0x10] sm:$0xf]
        %v1739 = vld [vmem:[#allocation10 + $0x14] sm:$0xf]
        %v1740 = vld [vmem:[#allocation10 + $0x18] sm:$0xf]
        %v1741 = vld [vmem:[#allocation10 + $0x1c] sm:$0xf]
        %v1742 = vld [vmem:[#allocation10 + $0x20] sm:$0xf]
        %v1743 = vld [vmem:[#allocation10 + $0x24] sm:$0xf]
        %v1744 = vld [vmem:[#allocation10 + $0x28] sm:$0xf]
        %v1745 = vld [vmem:[#allocation10 + $0x2c] sm:$0xf]
        %v1746 = vld [vmem:[#allocation10 + $0x30] sm:$0xf]
        %v1747 = vld [vmem:[#allocation10 + $0x34] sm:$0xf]
        %v1748 = vld [vmem:[#allocation10 + $0x38] sm:$0xf]
        %v1749 = vld [vmem:[#allocation10 + $0x3c] sm:$0xf]
        %v1750 = vld [vmem:[#allocation10 + $0x40] sm:$0xf]
        %v1751 = vld [vmem:[#allocation10 + $0x44] sm:$0xf]
        %v1752 = vld [vmem:[#allocation10 + $0x48] sm:$0xf]
        %v1753 = vld [vmem:[#allocation10 + $0x4c] sm:$0xf]
        %v1754 = vld [vmem:[#allocation10 + $0x50] sm:$0xf]
        %v1755 = vld [vmem:[#allocation10 + $0x54] sm:$0xf]
        %v1756 = vld [vmem:[#allocation10 + $0x58] sm:$0xf]
        %v1757 = vld [vmem:[#allocation10 + $0x5c] sm:$0xf]
        %v1758 = vld [vmem:[#allocation10 + $0x60] sm:$0xf]
        %v1759 = vld [vmem:[#allocation10 + $0x64] sm:$0xf]
        %v1760 = vld [vmem:[#allocation10 + $0x68] sm:$0xf]
        %v1761 = vld [vmem:[#allocation10 + $0x6c] sm:$0xf]
        %v1762 = vld [vmem:[#allocation10 + $0x70] sm:$0xf]
        %v1763 = vld [vmem:[#allocation10 + $0x74] sm:$0xf]
        %v1764 = vld [vmem:[#allocation10 + $0x78] sm:$0xf]
        %v1765 = vld [vmem:[#allocation10 + $0x7c] sm:$0xf]
        %v1766 = vld [vmem:[%s6] sm:$0x1]
        %v1768 = vperm.slane %v1766, 0
        %v1802 = vunpack.c.l.b16 %v1734
        %v1803 = vunpack.c.l.b16 %v1735
        %v1804 = vunpack.c.l.b16 %v1736
        %v1805 = vunpack.c.l.b16 %v1737
        %v1806 = vunpack.c.l.b16 %v1738
        %v1807 = vunpack.c.l.b16 %v1739
        %v1808 = vunpack.c.l.b16 %v1740
        %v1809 = vunpack.c.l.b16 %v1741
        %v1810 = vunpack.c.l.b16 %v1742
        %v1811 = vunpack.c.l.b16 %v1743
        %v1812 = vunpack.c.l.b16 %v1744
        %v1813 = vunpack.c.l.b16 %v1745
        %v1814 = vunpack.c.l.b16 %v1746
        %v1815 = vunpack.c.l.b16 %v1747
        %v1816 = vunpack.c.l.b16 %v1748
        %v1817 = vunpack.c.l.b16 %v1749
        %v1818 = vunpack.c.l.b16 %v1750
        %v1819 = vunpack.c.l.b16 %v1751
        %v1820 = vunpack.c.l.b16 %v1752
        %v1821 = vunpack.c.l.b16 %v1753
        %v1822 = vunpack.c.l.b16 %v1754
        %v1823 = vunpack.c.l.b16 %v1755
        %v1824 = vunpack.c.l.b16 %v1756
        %v1825 = vunpack.c.l.b16 %v1757
        %v1826 = vunpack.c.l.b16 %v1758
        %v1827 = vunpack.c.l.b16 %v1759
        %v1828 = vunpack.c.l.b16 %v1760
        %v1829 = vunpack.c.l.b16 %v1761
        %v1830 = vunpack.c.l.b16 %v1762
        %v1831 = vunpack.c.l.b16 %v1763
        %v1832 = vunpack.c.l.b16 %v1764
        %v1833 = vunpack.c.l.b16 %v1765
        %v1834 = vpack.c.b16 %v1803, %v1802
        %v1835 = vpack.c.b16 %v1805, %v1804
        %v1836 = vpack.c.b16 %v1807, %v1806
        %v1837 = vpack.c.b16 %v1809, %v1808
        %v1838 = vpack.c.b16 %v1811, %v1810
        %v1839 = vpack.c.b16 %v1813, %v1812
        %v1840 = vpack.c.b16 %v1815, %v1814
        %v1841 = vpack.c.b16 %v1817, %v1816
        %v1842 = vpack.c.b16 %v1819, %v1818
        %v1843 = vpack.c.b16 %v1821, %v1820
        %v1844 = vpack.c.b16 %v1823, %v1822
        %v1845 = vpack.c.b16 %v1825, %v1824
        %v1846 = vpack.c.b16 %v1827, %v1826
        %v1847 = vpack.c.b16 %v1829, %v1828
        %v1848 = vpack.c.b16 %v1831, %v1830
        %v1849 = vpack.c.b16 %v1833, %v1832
        %1866 = vmatpush.bf16.msra.mxu0 %v1841
        %1867 = vmatpush.bf16.msra.mxu0 %v1840
        %1868 = vmatpush.bf16.msra.mxu0 %v1839
        %1869 = vmatpush.bf16.msra.mxu0 %v1838
        %1870 = vmatpush.bf16.msra.mxu0 %v1837
        %1871 = vmatpush.bf16.msra.mxu0 %v1836
        %1872 = vmatpush.bf16.msra.mxu0 %v1835
        %1873 = vmatpush.bf16.msra.mxu0 %v1834
        %1874 = vmatmul.bf16.gmra.mxu0 %v1718
        %v1875 = vpop.f32.mrf.mxu0
        %v1876 = vadd.f32 %v1768, %v1875
        %v1877 = vpop.f32.mrf.mxu0
        %v1878 = vadd.f32 %v1768, %v1877
        %1879 = vmatmul.bf16.gmra.mxu0 %v1720
        %v1880 = vpop.f32.mrf.mxu0
        %v1881 = vadd.f32 %v1768, %v1880
        %v1882 = vpop.f32.mrf.mxu0
        %v1883 = vadd.f32 %v1768, %v1882
        %1884 = vmatmul.bf16.gmra.mxu0 %v1722
        %v1885 = vpop.f32.mrf.mxu0
        %v1886 = vadd.f32 %v1768, %v1885
        %v1887 = vpop.f32.mrf.mxu0
        %v1888 = vadd.f32 %v1768, %v1887
        %1889 = vmatmul.bf16.gmra.mxu0 %v1724
        %v1890 = vpop.f32.mrf.mxu0
        %v1891 = vadd.f32 %v1768, %v1890
        %v1892 = vpop.f32.mrf.mxu0
        %v1893 = vadd.f32 %v1768, %v1892
        %1894 = vmatmul.bf16.gmra.mxu0 %v1726
        %v1895 = vpop.f32.mrf.mxu0
        %v1896 = vadd.f32 %v1768, %v1895
        %v1897 = vpop.f32.mrf.mxu0
        %v1898 = vadd.f32 %v1768, %v1897
        %1899 = vmatmul.bf16.gmra.mxu0 %v1728
        %v1900 = vpop.f32.mrf.mxu0
        %v1901 = vadd.f32 %v1768, %v1900
        %v1902 = vpop.f32.mrf.mxu0
        %v1903 = vadd.f32 %v1768, %v1902
        %1904 = vmatmul.bf16.gmra.mxu0 %v1730
        %v1905 = vpop.f32.mrf.mxu0
        %v1906 = vadd.f32 %v1768, %v1905
        %v1907 = vpop.f32.mrf.mxu0
        %v1908 = vadd.f32 %v1768, %v1907
        %1909 = vmatmul.bf16.gmra.mxu0 %v1732
        %v1910 = vpop.f32.mrf.mxu0
        %v1911 = vadd.f32 %v1768, %v1910
        %v1912 = vpop.f32.mrf.mxu0
        %v1913 = vadd.f32 %v1768, %v1912
        %1914 = vdwg.mxu0
        %1915 = vmatpush.bf16.msra.mxu0 %v1849
        %1916 = vmatpush.bf16.msra.mxu0 %v1848
        %1917 = vmatpush.bf16.msra.mxu0 %v1847
        %1918 = vmatpush.bf16.msra.mxu0 %v1846
        %1919 = vmatpush.bf16.msra.mxu0 %v1845
        %1920 = vmatpush.bf16.msra.mxu0 %v1844
        %1921 = vmatpush.bf16.msra.mxu0 %v1843
        %1922 = vmatpush.bf16.msra.mxu0 %v1842
        %1923 = vmatmul.bf16.gmra.mxu0 %v1719
        %v1924 = vpop.f32.mrf.mxu0
        %v1925 = vadd.f32 %v1876, %v1924
        %v1926 = vpop.f32.mrf.mxu0
        %v1927 = vadd.f32 %v1878, %v1926
        %1928 = vmatmul.bf16.gmra.mxu0 %v1721
        %v1929 = vpop.f32.mrf.mxu0
        %v1930 = vadd.f32 %v1881, %v1929
        %v1931 = vpop.f32.mrf.mxu0
        %v1932 = vadd.f32 %v1883, %v1931
        %1933 = vmatmul.bf16.gmra.mxu0 %v1723
        %v1934 = vpop.f32.mrf.mxu0
        %v1935 = vadd.f32 %v1886, %v1934
        %v1936 = vpop.f32.mrf.mxu0
        %v1937 = vadd.f32 %v1888, %v1936
        %1938 = vmatmul.bf16.gmra.mxu0 %v1725
        %v1939 = vpop.f32.mrf.mxu0
        %v1940 = vadd.f32 %v1891, %v1939
        %v1941 = vpop.f32.mrf.mxu0
        %v1942 = vadd.f32 %v1893, %v1941
        %1943 = vmatmul.bf16.gmra.mxu0 %v1727
        %v1944 = vpop.f32.mrf.mxu0
        %v1945 = vadd.f32 %v1896, %v1944
        %v1946 = vpop.f32.mrf.mxu0
        %v1947 = vadd.f32 %v1898, %v1946
        %1948 = vmatmul.bf16.gmra.mxu0 %v1729
        %v1949 = vpop.f32.mrf.mxu0
        %v1950 = vadd.f32 %v1901, %v1949
        %v1951 = vpop.f32.mrf.mxu0
        %v1952 = vadd.f32 %v1903, %v1951
        %1953 = vmatmul.bf16.gmra.mxu0 %v1731
        %v1954 = vpop.f32.mrf.mxu0
        %v1955 = vadd.f32 %v1906, %v1954
        %v1956 = vpop.f32.mrf.mxu0
        %v1957 = vadd.f32 %v1908, %v1956
        %1958 = vmatmul.bf16.gmra.mxu0 %v1733
        %v1959 = vpop.f32.mrf.mxu0
        %v1960 = vadd.f32 %v1911, %v1959
        %v1961 = vpop.f32.mrf.mxu0
        %v1962 = vadd.f32 %v1913, %v1961
        %1963 = vdwg.mxu0
        %v1964 = vpack.c.bf16 %v1925, %v1925
        %v1965 = vpack.c.bf16 %v1927, %v1927
        %v1966 = vpack.c.bf16 %v1930, %v1930
        %v1967 = vpack.c.bf16 %v1932, %v1932
        %v1968 = vpack.c.bf16 %v1935, %v1935
        %v1969 = vpack.c.bf16 %v1937, %v1937
        %v1970 = vpack.c.bf16 %v1940, %v1940
        %v1971 = vpack.c.bf16 %v1942, %v1942
        %v1972 = vpack.c.bf16 %v1945, %v1945
        %v1973 = vpack.c.bf16 %v1947, %v1947
        %v1974 = vpack.c.bf16 %v1950, %v1950
        %v1975 = vpack.c.bf16 %v1952, %v1952
        %v1976 = vpack.c.bf16 %v1955, %v1955
        %v1977 = vpack.c.bf16 %v1957, %v1957
        %v1978 = vpack.c.bf16 %v1960, %v1960
        %v1979 = vpack.c.bf16 %v1962, %v1962
        %1980 = vst [vmem:[%s363] sm:$0xf] %v1964
        %1981 = vst [vmem:[%s363 + $0x4] sm:$0xf] %v1965
        %1982 = vst [vmem:[%s363 + $0x8] sm:$0xf] %v1966
        %1983 = vst [vmem:[%s363 + $0xc] sm:$0xf] %v1967
        %1984 = vst [vmem:[%s363 + $0x10] sm:$0xf] %v1968
        %1985 = vst [vmem:[%s363 + $0x14] sm:$0xf] %v1969
        %1986 = vst [vmem:[%s363 + $0x18] sm:$0xf] %v1970
        %1987 = vst [vmem:[%s363 + $0x1c] sm:$0xf] %v1971
        %1988 = vst [vmem:[%s363 + $0x20] sm:$0xf] %v1972
        %1989 = vst [vmem:[%s363 + $0x24] sm:$0xf] %v1973
        %1990 = vst [vmem:[%s363 + $0x28] sm:$0xf] %v1974
        %1991 = vst [vmem:[%s363 + $0x2c] sm:$0xf] %v1975
        %1992 = vst [vmem:[%s363 + $0x30] sm:$0xf] %v1976
        %1993 = vst [vmem:[%s363 + $0x34] sm:$0xf] %v1977
        %1994 = vst [vmem:[%s363 + $0x38] sm:$0xf] %v1978
        %1995 = vst [vmem:[%s363 + $0x3c] sm:$0xf] %v1979
        %s1996 = sand.u32 %s186, 1
        %s1997 = scalar_lea.sflag [#allocation4], %s1996
        %s1998 = sand.u32 %s186, 1
        %s1999 = smul.addr %s1998, 64
        %s2000 = scalar_lea.vmem [#allocation11], %s1999
        // Predicated region
        $region69: #{tpu_custom_call.1} parent=47 // pred_check
          %p2001 = pneg %p196
        $region70: #{tpu_custom_call.1} parent=47 // pred_check_branch
          %2003 = sbr.rel (%p2001) target = $region72
        $region71: #{tpu_custom_call.1} parent=47 // pred_region
          %s2004 = smul.u32 16, %s26
          %2006 = vsyncadd %s1997, 0
          %s2007 = smul.addr %s2004, 4
          %s2008 = scalar_lea.hbm %s7, %s2007
          %s2009 = sshll.u32 %s2000, 4
          %s2010 = int_to_ptr.vmem [resolvable:$true] %s2009
          %s2011 = sshll.u32 %s2008, 4
          %s2012 = int_to_ptr.hbm [resolvable:$true] %s2011
          %2017 = dma.vmem_to_hbm [thread:$0]  %s2010, 1024, %s2012, %s1997, 64, 64, 4
        $region72: #{tpu_custom_call.1} parent=47 // pred_fallthru
          _
      $region48: #{tpu_custom_call.1} parent=5 // pred_fallthru
        _
      %p2018 = scmp.le.s32.totalorder 2, %s21
      // Predicated region
      $region73: #{tpu_custom_call.1} parent=5 // pred_check
        %p2019 = pneg %p2018
      $region74: #{tpu_custom_call.1} parent=5 // pred_check_branch
        %2021 = sbr.rel (%p2019) target = $region76
      $region75: #{tpu_custom_call.1} parent=5 // pred_region
        %s2022 = ssub.s32 %s21, 2
        // Predicated region
        $region77: #{tpu_custom_call.1} parent=75 // pred_check
          %p2023 = pneg %p202
        $region78: #{tpu_custom_call.1} parent=75 // pred_check_branch
          %2025 = sbr.rel (%p2023) target = $region80
        $region79: #{tpu_custom_call.1} parent=75 // pred_region
          %s2026 = sand.u32 %s187, 1
          %s2027 = scalar_lea.sflag [#allocation4], %s2026
          %s2028 = sand.u32 %s187, 1
          %s2029 = smul.addr %s2028, 64
          %s2030 = scalar_lea.vmem [#allocation11], %s2029
          %2032 = dma.done %s2027, 1024
        $region80: #{tpu_custom_call.1} parent=75 // pred_fallthru
          _
      $region76: #{tpu_custom_call.1} parent=5 // pred_fallthru
        _
    $region6: #{tpu_custom_call.1} parent=1 // loop_footer
      %s25 = sadd.s32 1, %s21
    $region7: #{tpu_custom_call.1} parent=1 // loop_footer_branch
      %20 = sbr.rel target = $region3
    $region8: #{tpu_custom_call.1} parent=1 // loop_exit
      _
    %2033 = vsyncpa [#allocation3], 1
    %s2034 = scalar_lea.sflag [#allocation3], 1
    %2035 = vsyncpa %s2034, 1
    %2036 = vsyncpa [#allocation6], 1
    %2037 = vsyncpa [#allocation9], 1
    %2038 = vsyncpa [#allocation4], 1
    %s2039 = scalar_lea.sflag [#allocation4], 1
    %2040 = vsyncpa %s2039, 1

</llo_original>
